<compile_context>
chip_gen: v6e
topology: v6e:2x2x1
jax: 0.10.0
libtpu: 0.0.40
codegen_flags: <defaults>
</compile_context>

<pallas_src>
import functools

import numpy as np
import jax
import jax.numpy as jnp
from jax.experimental import pallas as pl
from jax.experimental.pallas import tpu as pltpu


def _transition_kernel(x_ref, scale_ref, shift_ref, w_ref, o_ref, *, groups):
    # x_ref:     (G, Cin, H, W)          VMEM block: G whole images, NCHW
    # scale_ref: (Cin,)                  SMEM folded BN scale  gamma/sqrt(var+eps)
    # shift_ref: (Cin,)                  SMEM folded BN shift  beta - mean*scale
    # w_ref:     (Cout, Cin//groups)     SMEM grouped 1x1 conv weight (squeezed)
    # o_ref:     (G, Cout, H//2, W//2)   VMEM block, NCHW
    G, Cin, H, W = x_ref.shape
    _, Cout, Ho, Wo = o_ref.shape
    cin_pg = Cin // groups
    cout_pg = Cout // groups

    x = x_ref[...]  # (G, Cin, H, W)

    # Per input channel: BN (scalar scale/shift from SMEM) + ReLU + 2x2/2
    # average pool.  All VPU work; the only cross-lane ops are two tiny
    # minor-dim transposes (XLU, otherwise idle here).
    pooled = []  # Cin entries of (G, Wo, Ho)  (spatially transposed maps)
    for c in range(Cin):
        yc = jnp.maximum(x[:, c] * scale_ref[c] + shift_ref[c], 0.0)  # (G, H, W)
        # pool along H: regroup rows into (Ho, 2) and add the two parities
        yh = yc.reshape(G, Ho, 2, W)
        hs = yh[:, :, 0, :] + yh[:, :, 1, :]                           # (G, Ho, W)
        # pool along W: swap the minor dims, then the same sublane-split trick
        ht = jnp.swapaxes(hs, -1, -2)                                  # (G, W, Ho)
        hw = ht.reshape(G, Wo, 2, Ho)
        pooled.append((hw[:, :, 0, :] + hw[:, :, 1, :]) * 0.25)        # (G, Wo, Ho)

    # Grouped 1x1 conv as per-group scalar multiply-accumulates (VPU): at these
    # channel counts an MXU pass would be latency-bound and almost entirely
    # idle, and this uses the block-diagonal sparsity exactly.
    for d in range(Cout):
        base = (d // cout_pg) * cin_pg
        acc = pooled[base] * w_ref[d, 0]
        for j in range(1, cin_pg):
            acc = acc + pooled[base + j] * w_ref[d, j]
        # un-transpose the spatial map and write one output channel
        o_ref[:, d, :, :] = jnp.swapaxes(acc, -1, -2).astype(o_ref.dtype)


def _choose_images_per_block(n, cin, h, w, itemsize, target_bytes=4 << 20):
    """Largest per-step image count that (a) keeps a block <= target_bytes,
    (b) leaves >=2 grid steps when possible (v7x has 2 TensorCores), and
    (c) divides the batch."""
    per_img = max(1, cin * h * w * itemsize)
    g = int(max(1, min(n, target_bytes // per_img)))
    while g > 1 and -(-n // g) < 2:
        g -= 1
    while n % g:
        g -= 1
    return g


def transition_forward(x_nchw, bn_scale, bn_shift, w2d, groups,
                       images_per_block=None):
    """x_nchw: (N, Cin, H, W) -> (N, Cout, H//2, W//2); NCHW in and out.

    bn_scale / bn_shift: (Cin,) folded eval-mode BatchNorm parameters.
    w2d: (Cout, Cin//groups) squeezed grouped 1x1 conv weight.
    """
    N, Cin, H, W = x_nchw.shape
    Cout, cin_pg = w2d.shape
    assert cin_pg * groups == Cin and Cout % groups == 0
    assert H % 2 == 0 and W % 2 == 0
    Ho, Wo = H // 2, W // 2

    if images_per_block is None:
        images_per_block = _choose_images_per_block(
            N, Cin, H, W, x_nchw.dtype.itemsize)
    G = images_per_block
    assert N % G == 0
    grid = (N // G,)

    kernel = functools.partial(_transition_kernel, groups=groups)
    smem = pltpu.MemorySpace.SMEM

    return pl.pallas_call(
        kernel,
        out_shape=jax.ShapeDtypeStruct((N, Cout, Ho, Wo), x_nchw.dtype),
        grid_spec=pltpu.PrefetchScalarGridSpec(
            num_scalar_prefetch=0,
            grid=grid,
            in_specs=[
                pl.BlockSpec((G, Cin, H, W), lambda i: (i, 0, 0, 0)),
                pl.BlockSpec((Cin,), lambda i: (0,), memory_space=smem),
                pl.BlockSpec((Cin,), lambda i: (0,), memory_space=smem),
                pl.BlockSpec((Cout, cin_pg), lambda i: (0, 0),
                             memory_space=smem),
            ],
            out_specs=pl.BlockSpec((G, Cout, Ho, Wo), lambda i: (i, 0, 0, 0)),
        ),
        compiler_params=pltpu.CompilerParams(
            dimension_semantics=("parallel",)),
    )(x_nchw, bn_scale, bn_shift, w2d)


if __name__ == "__main__":
    # Module config: _Transition(in_channels=8, out_channels=4, group_1x1=2), arch=0
    N, Cin, H, W = 2, 8, 16, 16
    Cout, groups = 4, 2
    cin_pg, cout_pg = Cin // groups, Cout // groups

    key = jax.random.PRNGKey(0)
    kx, kw, kg, kb, km, kv = jax.random.split(key, 6)

    x = jax.random.normal(kx, (N, Cin, H, W), dtype=jnp.float32)

    # BatchNorm2d parameters / running stats (eval mode, folded)
    gamma = 1.0 + 0.1 * jax.random.normal(kg, (Cin,), dtype=jnp.float32)
    beta = 0.1 * jax.random.normal(kb, (Cin,), dtype=jnp.float32)
    running_mean = 0.1 * jax.random.normal(km, (Cin,), dtype=jnp.float32)
    running_var = jnp.abs(1.0 + 0.1 * jax.random.normal(kv, (Cin,), dtype=jnp.float32))
    eps = 1e-5
    inv_std = gamma / jnp.sqrt(running_var + eps)
    bn_scale = inv_std                                  # (Cin,)
    bn_shift = beta - running_mean * inv_std            # (Cin,)

    # Grouped 1x1 conv weight: (Cout, Cin//groups, 1, 1), bias=False
    w_grouped = 0.1 * jax.random.normal(kw, (Cout, cin_pg, 1, 1), dtype=jnp.float32)
    w2d = w_grouped[:, :, 0, 0]                          # (Cout, Cin//groups)

    out = transition_forward(x, bn_scale, bn_shift, w2d, groups)
    out = jax.block_until_ready(out)
    assert out.shape == (N, Cout, H // 2, W // 2), out.shape

    # Plain-JAX reference in the ORIGINAL op order: BN -> ReLU -> grouped 1x1
    # conv -> 2x2/2 avg pool (validates the pool/conv commutation too).
    y = jnp.maximum(x * bn_scale[None, :, None, None]
                    + bn_shift[None, :, None, None], 0.0)
    zs = []
    for g in range(groups):
        yg = y[:, g * cin_pg:(g + 1) * cin_pg]
        wg = w2d[g * cout_pg:(g + 1) * cout_pg]
        zs.append(jnp.einsum("nchw,dc->ndhw", yg, wg))
    z = jnp.concatenate(zs, axis=1)                      # (N, Cout, H, W)
    ref = z.reshape(N, Cout, H // 2, 2, W // 2, 2).mean(axis=(3, 5))

    np.testing.assert_allclose(np.asarray(out), np.asarray(ref),
                               rtol=1e-5, atol=1e-5)

    print("KERNEL_OK")
</pallas_src>

<mosaic_0001>
module attributes {stable_mosaic.version = 11 : i64} {
  func.func @_transition_kernel(%arg0: i32, %arg1: memref<1x8x16x16xf32, #tpu.memory_space<vmem>>, %arg2: memref<8xf32, #tpu.memory_space<smem>>, %arg3: memref<8xf32, #tpu.memory_space<smem>>, %arg4: memref<4x4xf32, #tpu.memory_space<smem>>, %arg5: memref<1x4x8x8xf32, #tpu.memory_space<vmem>>) attributes {dimension_semantics = [#tpu.dimension_semantics<parallel>], iteration_bounds = array<i64: 2>, scalar_prefetch = 0 : i64, scratch_operands = 0 : i64, tpu.core_type = #tpu.core_type<tc>, window_params = [{transform_indices = @transform_0, window_bounds = array<i64: 1, 8, 16, 16>}, {transform_indices = @transform_1, window_bounds = array<i64: 8>}, {transform_indices = @transform_2, window_bounds = array<i64: 8>}, {transform_indices = @transform_3, window_bounds = array<i64: 4, 4>}, {transform_indices = @transform_4, window_bounds = array<i64: 1, 4, 8, 8>}]} {
    %c0 = arith.constant 0 : index
    %c0_0 = arith.constant 0 : index
    %c0_1 = arith.constant 0 : index
    %c0_2 = arith.constant 0 : index
    %0 = vector.load %arg1[%c0, %c0_0, %c0_1, %c0_2] : memref<1x8x16x16xf32, #tpu.memory_space<vmem>>, vector<1x8x16x16xf32>
    %1 = vector.extract_strided_slice %0 {offsets = [0, 0, 0, 0], sizes = [1, 1, 16, 16], strides = [1, 1, 1, 1]} : vector<1x8x16x16xf32> to vector<1x1x16x16xf32>
    %2 = vector.shape_cast %1 : vector<1x1x16x16xf32> to vector<1x16x16xf32>
    %c0_3 = arith.constant 0 : index
    %3 = memref.load %arg2[%c0_3] : memref<8xf32, #tpu.memory_space<smem>>
    %4 = vector.broadcast %3 : f32 to vector<1x16x16xf32>
    %5 = arith.mulf %2, %4 : vector<1x16x16xf32>
    %c0_4 = arith.constant 0 : index
    %6 = memref.load %arg3[%c0_4] : memref<8xf32, #tpu.memory_space<smem>>
    %7 = vector.broadcast %6 : f32 to vector<1x16x16xf32>
    %8 = arith.addf %5, %7 : vector<1x16x16xf32>
    %cst = arith.constant 0.000000e+00 : f32
    %9 = vector.broadcast %cst : f32 to vector<1x16x16xf32>
    %10 = arith.maximumf %8, %9 : vector<1x16x16xf32>
    %11 = vector.shape_cast %10 : vector<1x16x16xf32> to vector<1x8x2x16xf32>
    %12 = vector.extract_strided_slice %11 {offsets = [0, 0, 0, 0], sizes = [1, 8, 1, 16], strides = [1, 1, 1, 1]} : vector<1x8x2x16xf32> to vector<1x8x1x16xf32>
    %13 = vector.shape_cast %12 : vector<1x8x1x16xf32> to vector<1x8x16xf32>
    %14 = vector.extract_strided_slice %11 {offsets = [0, 0, 1, 0], sizes = [1, 8, 1, 16], strides = [1, 1, 1, 1]} : vector<1x8x2x16xf32> to vector<1x8x1x16xf32>
    %15 = vector.shape_cast %14 : vector<1x8x1x16xf32> to vector<1x8x16xf32>
    %16 = arith.addf %13, %15 : vector<1x8x16xf32>
    %17 = tpu.transpose %16, [0, 2, 1] : vector<1x8x16xf32> -> vector<1x16x8xf32>
    %18 = vector.shape_cast %17 : vector<1x16x8xf32> to vector<1x8x2x8xf32>
    %19 = vector.extract_strided_slice %18 {offsets = [0, 0, 0, 0], sizes = [1, 8, 1, 8], strides = [1, 1, 1, 1]} : vector<1x8x2x8xf32> to vector<1x8x1x8xf32>
    %20 = vector.shape_cast %19 : vector<1x8x1x8xf32> to vector<1x8x8xf32>
    %21 = vector.extract_strided_slice %18 {offsets = [0, 0, 1, 0], sizes = [1, 8, 1, 8], strides = [1, 1, 1, 1]} : vector<1x8x2x8xf32> to vector<1x8x1x8xf32>
    %22 = vector.shape_cast %21 : vector<1x8x1x8xf32> to vector<1x8x8xf32>
    %23 = arith.addf %20, %22 : vector<1x8x8xf32>
    %cst_5 = arith.constant 2.500000e-01 : f32
    %24 = vector.broadcast %cst_5 : f32 to vector<1x8x8xf32>
    %25 = arith.mulf %23, %24 : vector<1x8x8xf32>
    %26 = vector.extract_strided_slice %0 {offsets = [0, 1, 0, 0], sizes = [1, 1, 16, 16], strides = [1, 1, 1, 1]} : vector<1x8x16x16xf32> to vector<1x1x16x16xf32>
    %27 = vector.shape_cast %26 : vector<1x1x16x16xf32> to vector<1x16x16xf32>
    %c1 = arith.constant 1 : index
    %28 = memref.load %arg2[%c1] : memref<8xf32, #tpu.memory_space<smem>>
    %29 = vector.broadcast %28 : f32 to vector<1x16x16xf32>
    %30 = arith.mulf %27, %29 : vector<1x16x16xf32>
    %c1_6 = arith.constant 1 : index
    %31 = memref.load %arg3[%c1_6] : memref<8xf32, #tpu.memory_space<smem>>
    %32 = vector.broadcast %31 : f32 to vector<1x16x16xf32>
    %33 = arith.addf %30, %32 : vector<1x16x16xf32>
    %cst_7 = arith.constant 0.000000e+00 : f32
    %34 = vector.broadcast %cst_7 : f32 to vector<1x16x16xf32>
    %35 = arith.maximumf %33, %34 : vector<1x16x16xf32>
    %36 = vector.shape_cast %35 : vector<1x16x16xf32> to vector<1x8x2x16xf32>
    %37 = vector.extract_strided_slice %36 {offsets = [0, 0, 0, 0], sizes = [1, 8, 1, 16], strides = [1, 1, 1, 1]} : vector<1x8x2x16xf32> to vector<1x8x1x16xf32>
    %38 = vector.shape_cast %37 : vector<1x8x1x16xf32> to vector<1x8x16xf32>
    %39 = vector.extract_strided_slice %36 {offsets = [0, 0, 1, 0], sizes = [1, 8, 1, 16], strides = [1, 1, 1, 1]} : vector<1x8x2x16xf32> to vector<1x8x1x16xf32>
    %40 = vector.shape_cast %39 : vector<1x8x1x16xf32> to vector<1x8x16xf32>
    %41 = arith.addf %38, %40 : vector<1x8x16xf32>
    %42 = tpu.transpose %41, [0, 2, 1] : vector<1x8x16xf32> -> vector<1x16x8xf32>
    %43 = vector.shape_cast %42 : vector<1x16x8xf32> to vector<1x8x2x8xf32>
    %44 = vector.extract_strided_slice %43 {offsets = [0, 0, 0, 0], sizes = [1, 8, 1, 8], strides = [1, 1, 1, 1]} : vector<1x8x2x8xf32> to vector<1x8x1x8xf32>
    %45 = vector.shape_cast %44 : vector<1x8x1x8xf32> to vector<1x8x8xf32>
    %46 = vector.extract_strided_slice %43 {offsets = [0, 0, 1, 0], sizes = [1, 8, 1, 8], strides = [1, 1, 1, 1]} : vector<1x8x2x8xf32> to vector<1x8x1x8xf32>
    %47 = vector.shape_cast %46 : vector<1x8x1x8xf32> to vector<1x8x8xf32>
    %48 = arith.addf %45, %47 : vector<1x8x8xf32>
    %cst_8 = arith.constant 2.500000e-01 : f32
    %49 = vector.broadcast %cst_8 : f32 to vector<1x8x8xf32>
    %50 = arith.mulf %48, %49 : vector<1x8x8xf32>
    %51 = vector.extract_strided_slice %0 {offsets = [0, 2, 0, 0], sizes = [1, 1, 16, 16], strides = [1, 1, 1, 1]} : vector<1x8x16x16xf32> to vector<1x1x16x16xf32>
    %52 = vector.shape_cast %51 : vector<1x1x16x16xf32> to vector<1x16x16xf32>
    %c2 = arith.constant 2 : index
    %53 = memref.load %arg2[%c2] : memref<8xf32, #tpu.memory_space<smem>>
    %54 = vector.broadcast %53 : f32 to vector<1x16x16xf32>
    %55 = arith.mulf %52, %54 : vector<1x16x16xf32>
    %c2_9 = arith.constant 2 : index
    %56 = memref.load %arg3[%c2_9] : memref<8xf32, #tpu.memory_space<smem>>
    %57 = vector.broadcast %56 : f32 to vector<1x16x16xf32>
    %58 = arith.addf %55, %57 : vector<1x16x16xf32>
    %cst_10 = arith.constant 0.000000e+00 : f32
    %59 = vector.broadcast %cst_10 : f32 to vector<1x16x16xf32>
    %60 = arith.maximumf %58, %59 : vector<1x16x16xf32>
    %61 = vector.shape_cast %60 : vector<1x16x16xf32> to vector<1x8x2x16xf32>
    %62 = vector.extract_strided_slice %61 {offsets = [0, 0, 0, 0], sizes = [1, 8, 1, 16], strides = [1, 1, 1, 1]} : vector<1x8x2x16xf32> to vector<1x8x1x16xf32>
    %63 = vector.shape_cast %62 : vector<1x8x1x16xf32> to vector<1x8x16xf32>
    %64 = vector.extract_strided_slice %61 {offsets = [0, 0, 1, 0], sizes = [1, 8, 1, 16], strides = [1, 1, 1, 1]} : vector<1x8x2x16xf32> to vector<1x8x1x16xf32>
    %65 = vector.shape_cast %64 : vector<1x8x1x16xf32> to vector<1x8x16xf32>
    %66 = arith.addf %63, %65 : vector<1x8x16xf32>
    %67 = tpu.transpose %66, [0, 2, 1] : vector<1x8x16xf32> -> vector<1x16x8xf32>
    %68 = vector.shape_cast %67 : vector<1x16x8xf32> to vector<1x8x2x8xf32>
    %69 = vector.extract_strided_slice %68 {offsets = [0, 0, 0, 0], sizes = [1, 8, 1, 8], strides = [1, 1, 1, 1]} : vector<1x8x2x8xf32> to vector<1x8x1x8xf32>
    %70 = vector.shape_cast %69 : vector<1x8x1x8xf32> to vector<1x8x8xf32>
    %71 = vector.extract_strided_slice %68 {offsets = [0, 0, 1, 0], sizes = [1, 8, 1, 8], strides = [1, 1, 1, 1]} : vector<1x8x2x8xf32> to vector<1x8x1x8xf32>
    %72 = vector.shape_cast %71 : vector<1x8x1x8xf32> to vector<1x8x8xf32>
    %73 = arith.addf %70, %72 : vector<1x8x8xf32>
    %cst_11 = arith.constant 2.500000e-01 : f32
    %74 = vector.broadcast %cst_11 : f32 to vector<1x8x8xf32>
    %75 = arith.mulf %73, %74 : vector<1x8x8xf32>
    %76 = vector.extract_strided_slice %0 {offsets = [0, 3, 0, 0], sizes = [1, 1, 16, 16], strides = [1, 1, 1, 1]} : vector<1x8x16x16xf32> to vector<1x1x16x16xf32>
    %77 = vector.shape_cast %76 : vector<1x1x16x16xf32> to vector<1x16x16xf32>
    %c3 = arith.constant 3 : index
    %78 = memref.load %arg2[%c3] : memref<8xf32, #tpu.memory_space<smem>>
    %79 = vector.broadcast %78 : f32 to vector<1x16x16xf32>
    %80 = arith.mulf %77, %79 : vector<1x16x16xf32>
    %c3_12 = arith.constant 3 : index
    %81 = memref.load %arg3[%c3_12] : memref<8xf32, #tpu.memory_space<smem>>
    %82 = vector.broadcast %81 : f32 to vector<1x16x16xf32>
    %83 = arith.addf %80, %82 : vector<1x16x16xf32>
    %cst_13 = arith.constant 0.000000e+00 : f32
    %84 = vector.broadcast %cst_13 : f32 to vector<1x16x16xf32>
    %85 = arith.maximumf %83, %84 : vector<1x16x16xf32>
    %86 = vector.shape_cast %85 : vector<1x16x16xf32> to vector<1x8x2x16xf32>
    %87 = vector.extract_strided_slice %86 {offsets = [0, 0, 0, 0], sizes = [1, 8, 1, 16], strides = [1, 1, 1, 1]} : vector<1x8x2x16xf32> to vector<1x8x1x16xf32>
    %88 = vector.shape_cast %87 : vector<1x8x1x16xf32> to vector<1x8x16xf32>
    %89 = vector.extract_strided_slice %86 {offsets = [0, 0, 1, 0], sizes = [1, 8, 1, 16], strides = [1, 1, 1, 1]} : vector<1x8x2x16xf32> to vector<1x8x1x16xf32>
    %90 = vector.shape_cast %89 : vector<1x8x1x16xf32> to vector<1x8x16xf32>
    %91 = arith.addf %88, %90 : vector<1x8x16xf32>
    %92 = tpu.transpose %91, [0, 2, 1] : vector<1x8x16xf32> -> vector<1x16x8xf32>
    %93 = vector.shape_cast %92 : vector<1x16x8xf32> to vector<1x8x2x8xf32>
    %94 = vector.extract_strided_slice %93 {offsets = [0, 0, 0, 0], sizes = [1, 8, 1, 8], strides = [1, 1, 1, 1]} : vector<1x8x2x8xf32> to vector<1x8x1x8xf32>
    %95 = vector.shape_cast %94 : vector<1x8x1x8xf32> to vector<1x8x8xf32>
    %96 = vector.extract_strided_slice %93 {offsets = [0, 0, 1, 0], sizes = [1, 8, 1, 8], strides = [1, 1, 1, 1]} : vector<1x8x2x8xf32> to vector<1x8x1x8xf32>
    %97 = vector.shape_cast %96 : vector<1x8x1x8xf32> to vector<1x8x8xf32>
    %98 = arith.addf %95, %97 : vector<1x8x8xf32>
    %cst_14 = arith.constant 2.500000e-01 : f32
    %99 = vector.broadcast %cst_14 : f32 to vector<1x8x8xf32>
    %100 = arith.mulf %98, %99 : vector<1x8x8xf32>
    %101 = vector.extract_strided_slice %0 {offsets = [0, 4, 0, 0], sizes = [1, 1, 16, 16], strides = [1, 1, 1, 1]} : vector<1x8x16x16xf32> to vector<1x1x16x16xf32>
    %102 = vector.shape_cast %101 : vector<1x1x16x16xf32> to vector<1x16x16xf32>
    %c4 = arith.constant 4 : index
    %103 = memref.load %arg2[%c4] : memref<8xf32, #tpu.memory_space<smem>>
    %104 = vector.broadcast %103 : f32 to vector<1x16x16xf32>
    %105 = arith.mulf %102, %104 : vector<1x16x16xf32>
    %c4_15 = arith.constant 4 : index
    %106 = memref.load %arg3[%c4_15] : memref<8xf32, #tpu.memory_space<smem>>
    %107 = vector.broadcast %106 : f32 to vector<1x16x16xf32>
    %108 = arith.addf %105, %107 : vector<1x16x16xf32>
    %cst_16 = arith.constant 0.000000e+00 : f32
    %109 = vector.broadcast %cst_16 : f32 to vector<1x16x16xf32>
    %110 = arith.maximumf %108, %109 : vector<1x16x16xf32>
    %111 = vector.shape_cast %110 : vector<1x16x16xf32> to vector<1x8x2x16xf32>
    %112 = vector.extract_strided_slice %111 {offsets = [0, 0, 0, 0], sizes = [1, 8, 1, 16], strides = [1, 1, 1, 1]} : vector<1x8x2x16xf32> to vector<1x8x1x16xf32>
    %113 = vector.shape_cast %112 : vector<1x8x1x16xf32> to vector<1x8x16xf32>
    %114 = vector.extract_strided_slice %111 {offsets = [0, 0, 1, 0], sizes = [1, 8, 1, 16], strides = [1, 1, 1, 1]} : vector<1x8x2x16xf32> to vector<1x8x1x16xf32>
    %115 = vector.shape_cast %114 : vector<1x8x1x16xf32> to vector<1x8x16xf32>
    %116 = arith.addf %113, %115 : vector<1x8x16xf32>
    %117 = tpu.transpose %116, [0, 2, 1] : vector<1x8x16xf32> -> vector<1x16x8xf32>
    %118 = vector.shape_cast %117 : vector<1x16x8xf32> to vector<1x8x2x8xf32>
    %119 = vector.extract_strided_slice %118 {offsets = [0, 0, 0, 0], sizes = [1, 8, 1, 8], strides = [1, 1, 1, 1]} : vector<1x8x2x8xf32> to vector<1x8x1x8xf32>
    %120 = vector.shape_cast %119 : vector<1x8x1x8xf32> to vector<1x8x8xf32>
    %121 = vector.extract_strided_slice %118 {offsets = [0, 0, 1, 0], sizes = [1, 8, 1, 8], strides = [1, 1, 1, 1]} : vector<1x8x2x8xf32> to vector<1x8x1x8xf32>
    %122 = vector.shape_cast %121 : vector<1x8x1x8xf32> to vector<1x8x8xf32>
    %123 = arith.addf %120, %122 : vector<1x8x8xf32>
    %cst_17 = arith.constant 2.500000e-01 : f32
    %124 = vector.broadcast %cst_17 : f32 to vector<1x8x8xf32>
    %125 = arith.mulf %123, %124 : vector<1x8x8xf32>
    %126 = vector.extract_strided_slice %0 {offsets = [0, 5, 0, 0], sizes = [1, 1, 16, 16], strides = [1, 1, 1, 1]} : vector<1x8x16x16xf32> to vector<1x1x16x16xf32>
    %127 = vector.shape_cast %126 : vector<1x1x16x16xf32> to vector<1x16x16xf32>
    %c5 = arith.constant 5 : index
    %128 = memref.load %arg2[%c5] : memref<8xf32, #tpu.memory_space<smem>>
    %129 = vector.broadcast %128 : f32 to vector<1x16x16xf32>
    %130 = arith.mulf %127, %129 : vector<1x16x16xf32>
    %c5_18 = arith.constant 5 : index
    %131 = memref.load %arg3[%c5_18] : memref<8xf32, #tpu.memory_space<smem>>
    %132 = vector.broadcast %131 : f32 to vector<1x16x16xf32>
    %133 = arith.addf %130, %132 : vector<1x16x16xf32>
    %cst_19 = arith.constant 0.000000e+00 : f32
    %134 = vector.broadcast %cst_19 : f32 to vector<1x16x16xf32>
    %135 = arith.maximumf %133, %134 : vector<1x16x16xf32>
    %136 = vector.shape_cast %135 : vector<1x16x16xf32> to vector<1x8x2x16xf32>
    %137 = vector.extract_strided_slice %136 {offsets = [0, 0, 0, 0], sizes = [1, 8, 1, 16], strides = [1, 1, 1, 1]} : vector<1x8x2x16xf32> to vector<1x8x1x16xf32>
    %138 = vector.shape_cast %137 : vector<1x8x1x16xf32> to vector<1x8x16xf32>
    %139 = vector.extract_strided_slice %136 {offsets = [0, 0, 1, 0], sizes = [1, 8, 1, 16], strides = [1, 1, 1, 1]} : vector<1x8x2x16xf32> to vector<1x8x1x16xf32>
    %140 = vector.shape_cast %139 : vector<1x8x1x16xf32> to vector<1x8x16xf32>
    %141 = arith.addf %138, %140 : vector<1x8x16xf32>
    %142 = tpu.transpose %141, [0, 2, 1] : vector<1x8x16xf32> -> vector<1x16x8xf32>
    %143 = vector.shape_cast %142 : vector<1x16x8xf32> to vector<1x8x2x8xf32>
    %144 = vector.extract_strided_slice %143 {offsets = [0, 0, 0, 0], sizes = [1, 8, 1, 8], strides = [1, 1, 1, 1]} : vector<1x8x2x8xf32> to vector<1x8x1x8xf32>
    %145 = vector.shape_cast %144 : vector<1x8x1x8xf32> to vector<1x8x8xf32>
    %146 = vector.extract_strided_slice %143 {offsets = [0, 0, 1, 0], sizes = [1, 8, 1, 8], strides = [1, 1, 1, 1]} : vector<1x8x2x8xf32> to vector<1x8x1x8xf32>
    %147 = vector.shape_cast %146 : vector<1x8x1x8xf32> to vector<1x8x8xf32>
    %148 = arith.addf %145, %147 : vector<1x8x8xf32>
    %cst_20 = arith.constant 2.500000e-01 : f32
    %149 = vector.broadcast %cst_20 : f32 to vector<1x8x8xf32>
    %150 = arith.mulf %148, %149 : vector<1x8x8xf32>
    %151 = vector.extract_strided_slice %0 {offsets = [0, 6, 0, 0], sizes = [1, 1, 16, 16], strides = [1, 1, 1, 1]} : vector<1x8x16x16xf32> to vector<1x1x16x16xf32>
    %152 = vector.shape_cast %151 : vector<1x1x16x16xf32> to vector<1x16x16xf32>
    %c6 = arith.constant 6 : index
    %153 = memref.load %arg2[%c6] : memref<8xf32, #tpu.memory_space<smem>>
    %154 = vector.broadcast %153 : f32 to vector<1x16x16xf32>
    %155 = arith.mulf %152, %154 : vector<1x16x16xf32>
    %c6_21 = arith.constant 6 : index
    %156 = memref.load %arg3[%c6_21] : memref<8xf32, #tpu.memory_space<smem>>
    %157 = vector.broadcast %156 : f32 to vector<1x16x16xf32>
    %158 = arith.addf %155, %157 : vector<1x16x16xf32>
    %cst_22 = arith.constant 0.000000e+00 : f32
    %159 = vector.broadcast %cst_22 : f32 to vector<1x16x16xf32>
    %160 = arith.maximumf %158, %159 : vector<1x16x16xf32>
    %161 = vector.shape_cast %160 : vector<1x16x16xf32> to vector<1x8x2x16xf32>
    %162 = vector.extract_strided_slice %161 {offsets = [0, 0, 0, 0], sizes = [1, 8, 1, 16], strides = [1, 1, 1, 1]} : vector<1x8x2x16xf32> to vector<1x8x1x16xf32>
    %163 = vector.shape_cast %162 : vector<1x8x1x16xf32> to vector<1x8x16xf32>
    %164 = vector.extract_strided_slice %161 {offsets = [0, 0, 1, 0], sizes = [1, 8, 1, 16], strides = [1, 1, 1, 1]} : vector<1x8x2x16xf32> to vector<1x8x1x16xf32>
    %165 = vector.shape_cast %164 : vector<1x8x1x16xf32> to vector<1x8x16xf32>
    %166 = arith.addf %163, %165 : vector<1x8x16xf32>
    %167 = tpu.transpose %166, [0, 2, 1] : vector<1x8x16xf32> -> vector<1x16x8xf32>
    %168 = vector.shape_cast %167 : vector<1x16x8xf32> to vector<1x8x2x8xf32>
    %169 = vector.extract_strided_slice %168 {offsets = [0, 0, 0, 0], sizes = [1, 8, 1, 8], strides = [1, 1, 1, 1]} : vector<1x8x2x8xf32> to vector<1x8x1x8xf32>
    %170 = vector.shape_cast %169 : vector<1x8x1x8xf32> to vector<1x8x8xf32>
    %171 = vector.extract_strided_slice %168 {offsets = [0, 0, 1, 0], sizes = [1, 8, 1, 8], strides = [1, 1, 1, 1]} : vector<1x8x2x8xf32> to vector<1x8x1x8xf32>
    %172 = vector.shape_cast %171 : vector<1x8x1x8xf32> to vector<1x8x8xf32>
    %173 = arith.addf %170, %172 : vector<1x8x8xf32>
    %cst_23 = arith.constant 2.500000e-01 : f32
    %174 = vector.broadcast %cst_23 : f32 to vector<1x8x8xf32>
    %175 = arith.mulf %173, %174 : vector<1x8x8xf32>
    %176 = vector.extract_strided_slice %0 {offsets = [0, 7, 0, 0], sizes = [1, 1, 16, 16], strides = [1, 1, 1, 1]} : vector<1x8x16x16xf32> to vector<1x1x16x16xf32>
    %177 = vector.shape_cast %176 : vector<1x1x16x16xf32> to vector<1x16x16xf32>
    %c7 = arith.constant 7 : index
    %178 = memref.load %arg2[%c7] : memref<8xf32, #tpu.memory_space<smem>>
    %179 = vector.broadcast %178 : f32 to vector<1x16x16xf32>
    %180 = arith.mulf %177, %179 : vector<1x16x16xf32>
    %c7_24 = arith.constant 7 : index
    %181 = memref.load %arg3[%c7_24] : memref<8xf32, #tpu.memory_space<smem>>
    %182 = vector.broadcast %181 : f32 to vector<1x16x16xf32>
    %183 = arith.addf %180, %182 : vector<1x16x16xf32>
    %cst_25 = arith.constant 0.000000e+00 : f32
    %184 = vector.broadcast %cst_25 : f32 to vector<1x16x16xf32>
    %185 = arith.maximumf %183, %184 : vector<1x16x16xf32>
    %186 = vector.shape_cast %185 : vector<1x16x16xf32> to vector<1x8x2x16xf32>
    %187 = vector.extract_strided_slice %186 {offsets = [0, 0, 0, 0], sizes = [1, 8, 1, 16], strides = [1, 1, 1, 1]} : vector<1x8x2x16xf32> to vector<1x8x1x16xf32>
    %188 = vector.shape_cast %187 : vector<1x8x1x16xf32> to vector<1x8x16xf32>
    %189 = vector.extract_strided_slice %186 {offsets = [0, 0, 1, 0], sizes = [1, 8, 1, 16], strides = [1, 1, 1, 1]} : vector<1x8x2x16xf32> to vector<1x8x1x16xf32>
    %190 = vector.shape_cast %189 : vector<1x8x1x16xf32> to vector<1x8x16xf32>
    %191 = arith.addf %188, %190 : vector<1x8x16xf32>
    %192 = tpu.transpose %191, [0, 2, 1] : vector<1x8x16xf32> -> vector<1x16x8xf32>
    %193 = vector.shape_cast %192 : vector<1x16x8xf32> to vector<1x8x2x8xf32>
    %194 = vector.extract_strided_slice %193 {offsets = [0, 0, 0, 0], sizes = [1, 8, 1, 8], strides = [1, 1, 1, 1]} : vector<1x8x2x8xf32> to vector<1x8x1x8xf32>
    %195 = vector.shape_cast %194 : vector<1x8x1x8xf32> to vector<1x8x8xf32>
    %196 = vector.extract_strided_slice %193 {offsets = [0, 0, 1, 0], sizes = [1, 8, 1, 8], strides = [1, 1, 1, 1]} : vector<1x8x2x8xf32> to vector<1x8x1x8xf32>
    %197 = vector.shape_cast %196 : vector<1x8x1x8xf32> to vector<1x8x8xf32>
    %198 = arith.addf %195, %197 : vector<1x8x8xf32>
    %cst_26 = arith.constant 2.500000e-01 : f32
    %199 = vector.broadcast %cst_26 : f32 to vector<1x8x8xf32>
    %200 = arith.mulf %198, %199 : vector<1x8x8xf32>
    %c0_27 = arith.constant 0 : index
    %c0_28 = arith.constant 0 : index
    %201 = memref.load %arg4[%c0_27, %c0_28] : memref<4x4xf32, #tpu.memory_space<smem>>
    %202 = vector.broadcast %201 : f32 to vector<1x8x8xf32>
    %203 = arith.mulf %25, %202 : vector<1x8x8xf32>
    %c0_29 = arith.constant 0 : index
    %c1_30 = arith.constant 1 : index
    %204 = memref.load %arg4[%c0_29, %c1_30] : memref<4x4xf32, #tpu.memory_space<smem>>
    %205 = vector.broadcast %204 : f32 to vector<1x8x8xf32>
    %206 = arith.mulf %50, %205 : vector<1x8x8xf32>
    %207 = arith.addf %203, %206 : vector<1x8x8xf32>
    %c0_31 = arith.constant 0 : index
    %c2_32 = arith.constant 2 : index
    %208 = memref.load %arg4[%c0_31, %c2_32] : memref<4x4xf32, #tpu.memory_space<smem>>
    %209 = vector.broadcast %208 : f32 to vector<1x8x8xf32>
    %210 = arith.mulf %75, %209 : vector<1x8x8xf32>
    %211 = arith.addf %207, %210 : vector<1x8x8xf32>
    %c0_33 = arith.constant 0 : index
    %c3_34 = arith.constant 3 : index
    %212 = memref.load %arg4[%c0_33, %c3_34] : memref<4x4xf32, #tpu.memory_space<smem>>
    %213 = vector.broadcast %212 : f32 to vector<1x8x8xf32>
    %214 = arith.mulf %100, %213 : vector<1x8x8xf32>
    %215 = arith.addf %211, %214 : vector<1x8x8xf32>
    %216 = tpu.transpose %215, [0, 2, 1] : vector<1x8x8xf32> -> vector<1x8x8xf32>
    %c0_35 = arith.constant 0 : index
    %c0_36 = arith.constant 0 : index
    %c0_37 = arith.constant 0 : index
    %c0_38 = arith.constant 0 : index
    %217 = vector.load %arg5[%c0_35, %c0_36, %c0_37, %c0_38] : memref<1x4x8x8xf32, #tpu.memory_space<vmem>>, vector<1x1x8x8xf32>
    %218 = vector.shape_cast %217 : vector<1x1x8x8xf32> to vector<1x8x8xf32>
    %219 = vector.shape_cast %216 : vector<1x8x8xf32> to vector<1x1x8x8xf32>
    tpu.vector_store %arg5[%c0_35, %c0_36, %c0_37, %c0_38], %219 {strides = array<i32>} : memref<1x4x8x8xf32, #tpu.memory_space<vmem>>, vector<1x1x8x8xf32>,
    %c1_39 = arith.constant 1 : index
    %c0_40 = arith.constant 0 : index
    %220 = memref.load %arg4[%c1_39, %c0_40] : memref<4x4xf32, #tpu.memory_space<smem>>
    %221 = vector.broadcast %220 : f32 to vector<1x8x8xf32>
    %222 = arith.mulf %25, %221 : vector<1x8x8xf32>
    %c1_41 = arith.constant 1 : index
    %c1_42 = arith.constant 1 : index
    %223 = memref.load %arg4[%c1_41, %c1_42] : memref<4x4xf32, #tpu.memory_space<smem>>
    %224 = vector.broadcast %223 : f32 to vector<1x8x8xf32>
    %225 = arith.mulf %50, %224 : vector<1x8x8xf32>
    %226 = arith.addf %222, %225 : vector<1x8x8xf32>
    %c1_43 = arith.constant 1 : index
    %c2_44 = arith.constant 2 : index
    %227 = memref.load %arg4[%c1_43, %c2_44] : memref<4x4xf32, #tpu.memory_space<smem>>
    %228 = vector.broadcast %227 : f32 to vector<1x8x8xf32>
    %229 = arith.mulf %75, %228 : vector<1x8x8xf32>
    %230 = arith.addf %226, %229 : vector<1x8x8xf32>
    %c1_45 = arith.constant 1 : index
    %c3_46 = arith.constant 3 : index
    %231 = memref.load %arg4[%c1_45, %c3_46] : memref<4x4xf32, #tpu.memory_space<smem>>
    %232 = vector.broadcast %231 : f32 to vector<1x8x8xf32>
    %233 = arith.mulf %100, %232 : vector<1x8x8xf32>
    %234 = arith.addf %230, %233 : vector<1x8x8xf32>
    %235 = tpu.transpose %234, [0, 2, 1] : vector<1x8x8xf32> -> vector<1x8x8xf32>
    %c0_47 = arith.constant 0 : index
    %c1_48 = arith.constant 1 : index
    %c0_49 = arith.constant 0 : index
    %c0_50 = arith.constant 0 : index
    %236 = vector.load %arg5[%c0_47, %c1_48, %c0_49, %c0_50] : memref<1x4x8x8xf32, #tpu.memory_space<vmem>>, vector<1x1x8x8xf32>
    %237 = vector.shape_cast %236 : vector<1x1x8x8xf32> to vector<1x8x8xf32>
    %238 = vector.shape_cast %235 : vector<1x8x8xf32> to vector<1x1x8x8xf32>
    tpu.vector_store %arg5[%c0_47, %c1_48, %c0_49, %c0_50], %238 {strides = array<i32>} : memref<1x4x8x8xf32, #tpu.memory_space<vmem>>, vector<1x1x8x8xf32>,
    %c2_51 = arith.constant 2 : index
    %c0_52 = arith.constant 0 : index
    %239 = memref.load %arg4[%c2_51, %c0_52] : memref<4x4xf32, #tpu.memory_space<smem>>
    %240 = vector.broadcast %239 : f32 to vector<1x8x8xf32>
    %241 = arith.mulf %125, %240 : vector<1x8x8xf32>
    %c2_53 = arith.constant 2 : index
    %c1_54 = arith.constant 1 : index
    %242 = memref.load %arg4[%c2_53, %c1_54] : memref<4x4xf32, #tpu.memory_space<smem>>
    %243 = vector.broadcast %242 : f32 to vector<1x8x8xf32>
    %244 = arith.mulf %150, %243 : vector<1x8x8xf32>
    %245 = arith.addf %241, %244 : vector<1x8x8xf32>
    %c2_55 = arith.constant 2 : index
    %c2_56 = arith.constant 2 : index
    %246 = memref.load %arg4[%c2_55, %c2_56] : memref<4x4xf32, #tpu.memory_space<smem>>
    %247 = vector.broadcast %246 : f32 to vector<1x8x8xf32>
    %248 = arith.mulf %175, %247 : vector<1x8x8xf32>
    %249 = arith.addf %245, %248 : vector<1x8x8xf32>
    %c2_57 = arith.constant 2 : index
    %c3_58 = arith.constant 3 : index
    %250 = memref.load %arg4[%c2_57, %c3_58] : memref<4x4xf32, #tpu.memory_space<smem>>
    %251 = vector.broadcast %250 : f32 to vector<1x8x8xf32>
    %252 = arith.mulf %200, %251 : vector<1x8x8xf32>
    %253 = arith.addf %249, %252 : vector<1x8x8xf32>
    %254 = tpu.transpose %253, [0, 2, 1] : vector<1x8x8xf32> -> vector<1x8x8xf32>
    %c0_59 = arith.constant 0 : index
    %c2_60 = arith.constant 2 : index
    %c0_61 = arith.constant 0 : index
    %c0_62 = arith.constant 0 : index
    %255 = vector.load %arg5[%c0_59, %c2_60, %c0_61, %c0_62] : memref<1x4x8x8xf32, #tpu.memory_space<vmem>>, vector<1x1x8x8xf32>
    %256 = vector.shape_cast %255 : vector<1x1x8x8xf32> to vector<1x8x8xf32>
    %257 = vector.shape_cast %254 : vector<1x8x8xf32> to vector<1x1x8x8xf32>
    tpu.vector_store %arg5[%c0_59, %c2_60, %c0_61, %c0_62], %257 {strides = array<i32>} : memref<1x4x8x8xf32, #tpu.memory_space<vmem>>, vector<1x1x8x8xf32>,
    %c3_63 = arith.constant 3 : index
    %c0_64 = arith.constant 0 : index
    %258 = memref.load %arg4[%c3_63, %c0_64] : memref<4x4xf32, #tpu.memory_space<smem>>
    %259 = vector.broadcast %258 : f32 to vector<1x8x8xf32>
    %260 = arith.mulf %125, %259 : vector<1x8x8xf32>
    %c3_65 = arith.constant 3 : index
    %c1_66 = arith.constant 1 : index
    %261 = memref.load %arg4[%c3_65, %c1_66] : memref<4x4xf32, #tpu.memory_space<smem>>
    %262 = vector.broadcast %261 : f32 to vector<1x8x8xf32>
    %263 = arith.mulf %150, %262 : vector<1x8x8xf32>
    %264 = arith.addf %260, %263 : vector<1x8x8xf32>
    %c3_67 = arith.constant 3 : index
    %c2_68 = arith.constant 2 : index
    %265 = memref.load %arg4[%c3_67, %c2_68] : memref<4x4xf32, #tpu.memory_space<smem>>
    %266 = vector.broadcast %265 : f32 to vector<1x8x8xf32>
    %267 = arith.mulf %175, %266 : vector<1x8x8xf32>
    %268 = arith.addf %264, %267 : vector<1x8x8xf32>
    %c3_69 = arith.constant 3 : index
    %c3_70 = arith.constant 3 : index
    %269 = memref.load %arg4[%c3_69, %c3_70] : memref<4x4xf32, #tpu.memory_space<smem>>
    %270 = vector.broadcast %269 : f32 to vector<1x8x8xf32>
    %271 = arith.mulf %200, %270 : vector<1x8x8xf32>
    %272 = arith.addf %268, %271 : vector<1x8x8xf32>
    %273 = tpu.transpose %272, [0, 2, 1] : vector<1x8x8xf32> -> vector<1x8x8xf32>
    %c0_71 = arith.constant 0 : index
    %c3_72 = arith.constant 3 : index
    %c0_73 = arith.constant 0 : index
    %c0_74 = arith.constant 0 : index
    %274 = vector.load %arg5[%c0_71, %c3_72, %c0_73, %c0_74] : memref<1x4x8x8xf32, #tpu.memory_space<vmem>>, vector<1x1x8x8xf32>
    %275 = vector.shape_cast %274 : vector<1x1x8x8xf32> to vector<1x8x8xf32>
    %276 = vector.shape_cast %273 : vector<1x8x8xf32> to vector<1x1x8x8xf32>
    tpu.vector_store %arg5[%c0_71, %c3_72, %c0_73, %c0_74], %276 {strides = array<i32>} : memref<1x4x8x8xf32, #tpu.memory_space<vmem>>, vector<1x1x8x8xf32>,
    return
  }
  func.func @transform_0(%arg0: i32) -> (i32, i32, i32, i32) {
    %c0_i32 = arith.constant 0 : i32
    %c0_i32_0 = arith.constant 0 : i32
    %c0_i32_1 = arith.constant 0 : i32
    %c0_i32_2 = arith.constant 0 : i32
    return %arg0, %c0_i32, %c0_i32_0, %c0_i32_1 : i32, i32, i32, i32
  }
  func.func @transform_1(%arg0: i32) -> i32 {
    %c0_i32 = arith.constant 0 : i32
    %c0_i32_0 = arith.constant 0 : i32
    return %c0_i32 : i32
  }
  func.func @transform_2(%arg0: i32) -> i32 {
    %c0_i32 = arith.constant 0 : i32
    %c0_i32_0 = arith.constant 0 : i32
    return %c0_i32 : i32
  }
  func.func @transform_3(%arg0: i32) -> (i32, i32) {
    %c0_i32 = arith.constant 0 : i32
    %c0_i32_0 = arith.constant 0 : i32
    %c0_i32_1 = arith.constant 0 : i32
    return %c0_i32, %c0_i32_0 : i32, i32
  }
  func.func @transform_4(%arg0: i32) -> (i32, i32, i32, i32) {
    %c0_i32 = arith.constant 0 : i32
    %c0_i32_0 = arith.constant 0 : i32
    %c0_i32_1 = arith.constant 0 : i32
    %c0_i32_2 = arith.constant 0 : i32
    return %arg0, %c0_i32, %c0_i32_0, %c0_i32_1 : i32, i32, i32, i32
  }
}

</mosaic_0001>

<llo_original>
// kernel: tpu_custom_call.1
$region0: #{tpu_custom_call.1}
  #allocation0 [shape = 'u32[]', space=smem, size = 0x4, offset = 0x4, fixed_abs, tag = 'smem constant byte address 0x4 - core index']
  #allocation1 [shape = 'u32[144,128]{1,0:T(1,128)}', space=vmem, size = 0x12000, scoped, tag = 'internal scratch']
  %s0 = inlined_call_operand.hbm [shape: f32[2,8,16,16], index: 0, kind: input, shape index: {}]
  %s1 = inlined_call_operand.vmem [shape: f32[8], index: 1, kind: input, shape index: {}]
  %s2 = inlined_call_operand.hbm [shape: f32[8], index: 2, kind: input, shape index: {}]
  %s3 = inlined_call_operand.vmem [shape: f32[4,4], index: 3, kind: input, shape index: {}]
  %s4 = inlined_call_operand.hbm [shape: f32[2,4,8,8], index: 4, kind: output, shape index: {}]
  %s5 = sld [smem:[#allocation0]]
  $region65: #{tpu_custom_call.1} parent=0
    _
  %s7 = ssub.s32 1, %s5
  %s8 = scalar_select 0, %s7, %s5
  $region1: #{tpu_custom_call.1} parent=0
    #allocation2 [shape = 'u8[131072]{0}', space=vmem, size = 0x20000, scoped, tag = 'input window, operand 0']
    #allocation3 [shape = 's32[2]{0}', space=sflag, size = 0x8, scoped, tag = 'scoped memory for tpu_custom_call.1']
    #allocation4 [shape = 's32[2]{0}', space=sflag, size = 0x8, scoped, tag = 'scoped memory for tpu_custom_call.1']
    #allocation5 [shape = 's32[2]{0}', space=sflag, size = 0x8, scoped, tag = 'scoped memory for tpu_custom_call.1']
    #allocation6 [shape = 's32[2]{0}', space=sflag, size = 0x8, scoped, tag = 'scoped memory for tpu_custom_call.1']
    #allocation7 [shape = 'u8[512]{0}', space=smem, size = 0x200, scoped, tag = 'input window, operand 1, single buffered']
    #allocation8 [shape = 'u8[512]{0}', space=smem, size = 0x200, scoped, tag = 'input window, operand 2, single buffered']
    #allocation9 [shape = 'u8[2048]{0}', space=smem, size = 0x800, scoped, tag = 'input window, operand 3, single buffered']
    #allocation10 [shape = 's32[1]{0}', space=sflag, size = 0x4, scoped, tag = 'scoped memory for tpu_custom_call.1']
    #allocation11 [shape = 'u8[32768]{0}', space=vmem, size = 0x8000, scoped, tag = 'output window, operand 0']
    %9 = vsyncpa [#allocation3], 0
    %s10 = scalar_lea.sflag [#allocation3], 1
    %11 = vsyncpa %s10, 0
    %12 = vsyncpa [#allocation6], 0
    %13 = vsyncpa [#allocation5], 0
    %14 = vsyncpa [#allocation10], 0
    %15 = vsyncpa [#allocation4], 0
    %s16 = scalar_lea.sflag [#allocation4], 1
    %17 = vsyncpa %s16, 0
    loop: start=0, step=1, limit=4
    $region2: #{tpu_custom_call.1} parent=1 // loop_pre_header
      _
    $region3: #{tpu_custom_call.1} parent=1 // loop_header
      %s19 = sphi 0, %s23
      %p20 = scmp.ge.s32.totalorder %s19, 4
      %s29 = sphi 0, %s31
      %s32 = sphi 0, %s29
      %s33 = sphi 0, %s32
      %s49 = sphi 0, %s33
      %s53 = sphi 0, %s53
      %s55 = sphi 0, %s53
      %s56 = sphi 0, %s55
      %s70 = sphi 0, %s56
      %s74 = sphi 0, %s74
      %s76 = sphi 0, %s74
      %s77 = sphi 0, %s76
      %s91 = sphi 0, %s77
      %s95 = sphi 0, %s95
      %s97 = sphi 0, %s95
      %s98 = sphi 0, %s97
      %s112 = sphi 0, %s98
      %s118 = sphi 0, %s120
      %s121 = sphi 0, %s118
      %s122 = sphi 0, %s121
      %s138 = sphi 0, %s122
    $region4: #{tpu_custom_call.1} parent=1 // loop_header_branch
      %22 = sbr.rel (%p20) target = $region8
    $region5: #{tpu_custom_call.1} parent=1 // loop_body
      %s24 = ssub.s32 %s19, 1
      %s25 = ssub.s32 %s19, 2
      %s26 = sadd.s32 %s19, 1
      %s27 = ssub.s32 %s19, %s26
      %p28 = scmp.eq.s32.totalorder %s27, 0
      %s30 = sadd.s32 %s29, 1
      %s31 = scalar_select %p28, %s29, %s30
      %p34 = pneg %p28
      %p35 = scmp.eq.s32.totalorder %s19, 1
      %p36 = por %p34, %p35
      %p37 = scmp.ne.s32.totalorder %s29, %s32
      %p38 = scmp.eq.s32.totalorder %s19, 0
      %p39 = por %p37, %p38
      %p40 = scmp.ne.s32.totalorder %s29, %s32
      %p41 = scmp.eq.s32.totalorder %s24, 1
      %p42 = por %p40, %p41
      %p43 = scmp.ne.s32.totalorder %s32, %s33
      %p44 = scmp.eq.s32.totalorder %s24, 0
      %p45 = por %p43, %p44
      %p46 = scmp.ne.s32.totalorder %s32, %s33
      %p47 = scmp.eq.s32.totalorder %s25, 1
      %p48 = por %p46, %p47
      %p50 = scmp.ne.s32.totalorder %s33, %s49
      %p51 = scmp.eq.s32.totalorder %s25, 0
      %p52 = por %p50, %p51
      %s54 = sadd.s32 %s53, 1
      %p57 = scmp.eq.s32.totalorder %s19, 1
      %p58 = scmp.ne.s32.totalorder %s53, %s55
      %p59 = scmp.eq.s32.totalorder %s19, 0
      %p60 = por %p58, %p59
      %p61 = scmp.ne.s32.totalorder %s53, %s55
      %p62 = scmp.eq.s32.totalorder %s24, 1
      %p63 = por %p61, %p62
      %p64 = scmp.ne.s32.totalorder %s55, %s56
      %p65 = scmp.eq.s32.totalorder %s24, 0
      %p66 = por %p64, %p65
      %p67 = scmp.ne.s32.totalorder %s55, %s56
      %p68 = scmp.eq.s32.totalorder %s25, 1
      %p69 = por %p67, %p68
      %p71 = scmp.ne.s32.totalorder %s56, %s70
      %p72 = scmp.eq.s32.totalorder %s25, 0
      %p73 = por %p71, %p72
      %s75 = sadd.s32 %s74, 1
      %p78 = scmp.eq.s32.totalorder %s19, 1
      %p79 = scmp.ne.s32.totalorder %s74, %s76
      %p80 = scmp.eq.s32.totalorder %s19, 0
      %p81 = por %p79, %p80
      %p82 = scmp.ne.s32.totalorder %s74, %s76
      %p83 = scmp.eq.s32.totalorder %s24, 1
      %p84 = por %p82, %p83
      %p85 = scmp.ne.s32.totalorder %s76, %s77
      %p86 = scmp.eq.s32.totalorder %s24, 0
      %p87 = por %p85, %p86
      %p88 = scmp.ne.s32.totalorder %s76, %s77
      %p89 = scmp.eq.s32.totalorder %s25, 1
      %p90 = por %p88, %p89
      %p92 = scmp.ne.s32.totalorder %s77, %s91
      %p93 = scmp.eq.s32.totalorder %s25, 0
      %p94 = por %p92, %p93
      %s96 = sadd.s32 %s95, 1
      %p99 = scmp.eq.s32.totalorder %s19, 1
      %p100 = scmp.ne.s32.totalorder %s95, %s97
      %p101 = scmp.eq.s32.totalorder %s19, 0
      %p102 = por %p100, %p101
      %p103 = scmp.ne.s32.totalorder %s95, %s97
      %p104 = scmp.eq.s32.totalorder %s24, 1
      %p105 = por %p103, %p104
      %p106 = scmp.ne.s32.totalorder %s97, %s98
      %p107 = scmp.eq.s32.totalorder %s24, 0
      %p108 = por %p106, %p107
      %p109 = scmp.ne.s32.totalorder %s97, %s98
      %p110 = scmp.eq.s32.totalorder %s25, 1
      %p111 = por %p109, %p110
      %p113 = scmp.ne.s32.totalorder %s98, %s112
      %p114 = scmp.eq.s32.totalorder %s25, 0
      %p115 = por %p113, %p114
      %s116 = ssub.s32 %s19, %s26
      %p117 = scmp.eq.s32.totalorder %s116, 0
      %s119 = sadd.s32 %s118, 1
      %s120 = scalar_select %p117, %s118, %s119
      %p123 = pneg %p117
      %p124 = scmp.eq.s32.totalorder %s19, 1
      %p125 = por %p123, %p124
      %p126 = scmp.ne.s32.totalorder %s118, %s121
      %p127 = scmp.eq.s32.totalorder %s19, 0
      %p128 = por %p126, %p127
      %p129 = scmp.ne.s32.totalorder %s118, %s121
      %p130 = scmp.eq.s32.totalorder %s24, 1
      %p131 = por %p129, %p130
      %p132 = scmp.ne.s32.totalorder %s121, %s122
      %p133 = scmp.eq.s32.totalorder %s24, 0
      %p134 = por %p132, %p133
      %p135 = scmp.ne.s32.totalorder %s121, %s122
      %p136 = scmp.eq.s32.totalorder %s25, 1
      %p137 = por %p135, %p136
      %p139 = scmp.ne.s32.totalorder %s122, %s138
      %p140 = scmp.eq.s32.totalorder %s25, 0
      %p141 = por %p139, %p140
      %p142 = scmp.le.s32.totalorder 1, %s19
      %p143 = scmp.lt.s32.totalorder %s19, 3
      %p144 = pnand %p142, %p143
      %p145 = pneg %p144
      // Predicated region
      $region9: #{tpu_custom_call.1} parent=5 // pred_check
        _
      $region10: #{tpu_custom_call.1} parent=5 // pred_check_branch
        %147 = sbr.rel (%p144) target = $region12
      $region11: #{tpu_custom_call.1} parent=5 // pred_region
        %s148 = ssub.s32 %s19, 1
        // Predicated region
        $region13: #{tpu_custom_call.1} parent=11 // pred_check
          %p149 = pneg %p66
        $region14: #{tpu_custom_call.1} parent=11 // pred_check_branch
          %151 = sbr.rel (%p149) target = $region16
        $region15: #{tpu_custom_call.1} parent=11 // pred_region
          %s153 = ssub.s32 16, 16
          %154 = vsyncadd [#allocation6], %s153
          %s156 = sshll.u32 %s1, 4
          %s157 = int_to_ptr.vmem [resolvable:$true] %s156
          %159 = dma.vmem_to_smem %s157, 16, [#allocation7], [#allocation6]
        $region16: #{tpu_custom_call.1} parent=11 // pred_fallthru
          _
        // Predicated region
        $region17: #{tpu_custom_call.1} parent=11 // pred_check
          %p160 = pneg %p87
        $region18: #{tpu_custom_call.1} parent=11 // pred_check_branch
          %162 = sbr.rel (%p160) target = $region20
        $region19: #{tpu_custom_call.1} parent=11 // pred_region
          %s164 = ssub.s32 16, 16
          %165 = vsyncadd [#allocation5], %s164
          %168 = dma.hbm_to_smem %s2, 16, [#allocation8], [#allocation5]
        $region20: #{tpu_custom_call.1} parent=11 // pred_fallthru
          _
        // Predicated region
        $region21: #{tpu_custom_call.1} parent=11 // pred_check
          %p169 = pneg %p108
        $region22: #{tpu_custom_call.1} parent=11 // pred_check_branch
          %171 = sbr.rel (%p169) target = $region24
        $region23: #{tpu_custom_call.1} parent=11 // pred_region
          %s173 = ssub.s32 64, 64
          %174 = vsyncadd [#allocation10], %s173
          %s176 = sshll.u32 %s3, 4
          %s177 = int_to_ptr.vmem [resolvable:$true] %s176
          %179 = dma.vmem_to_smem %s177, 64, [#allocation9], [#allocation10]
        $region24: #{tpu_custom_call.1} parent=11 // pred_fallthru
          _
      $region12: #{tpu_custom_call.1} parent=5 // pred_fallthru
        _
      %p180 = scmp.lt.s32.totalorder %s19, 2
      // Predicated region
      $region25: #{tpu_custom_call.1} parent=5 // pred_check
        %p181 = pneg %p180
      $region26: #{tpu_custom_call.1} parent=5 // pred_check_branch
        %183 = sbr.rel (%p181) target = $region28
      $region27: #{tpu_custom_call.1} parent=5 // pred_region
        // Predicated region
        $region29: #{tpu_custom_call.1} parent=27 // pred_check
          %p184 = pneg %p39
        $region30: #{tpu_custom_call.1} parent=27 // pred_check_branch
          %186 = sbr.rel (%p184) target = $region32
        $region31: #{tpu_custom_call.1} parent=27 // pred_region
          %s187 = sand.u32 %s29, 1
          %s188 = scalar_lea.sflag [#allocation3], %s187
          %s189 = sand.u32 %s29, 1
          %s190 = smul.addr %s189, 128
          %s191 = scalar_lea.vmem [#allocation2], %s190
          %s193 = ssub.s32 2048, 2048
          %194 = vsyncadd %s188, %s193
          %s195 = smul.addr %s19, 16
          %s196 = smul.addr %s195, 128
          %s197 = scalar_lea.hbm %s0, %s196
          %s198 = sshll.u32 %s191, 4
          %s199 = int_to_ptr.vmem [resolvable:$true] %s198
          %204 = dma.hbm_to_vmem [thread:$0]  %s197, 2048, %s199, %s188, 128, 128, 8
        $region32: #{tpu_custom_call.1} parent=27 // pred_fallthru
          _
      $region28: #{tpu_custom_call.1} parent=5 // pred_fallthru
        _
      %p205 = scmp.le.s32.totalorder 1, %s19
      %p206 = scmp.lt.s32.totalorder %s19, 3
      %p207 = pnand %p205, %p206
      %p208 = pneg %p207
      // Predicated region
      $region33: #{tpu_custom_call.1} parent=5 // pred_check
        _
      $region34: #{tpu_custom_call.1} parent=5 // pred_check_branch
        %210 = sbr.rel (%p207) target = $region36
      $region35: #{tpu_custom_call.1} parent=5 // pred_region
        %s211 = ssub.s32 %s19, 1
        %s212 = sand.u32 %s32, 1
        %s213 = scalar_lea.sflag [#allocation3], %s212
        %s214 = sand.u32 %s32, 1
        %s215 = smul.addr %s214, 128
        %s216 = scalar_lea.vmem [#allocation2], %s215
        // Predicated region
        $region37: #{tpu_custom_call.1} parent=35 // pred_check
          %p217 = pneg %p45
        $region38: #{tpu_custom_call.1} parent=35 // pred_check_branch
          %219 = sbr.rel (%p217) target = $region40
        $region39: #{tpu_custom_call.1} parent=35 // pred_region
          %220 = dma.done %s213, 2048
        $region40: #{tpu_custom_call.1} parent=35 // pred_fallthru
          _
        // Predicated region
        $region41: #{tpu_custom_call.1} parent=35 // pred_check
          %p221 = pneg %p66
        $region42: #{tpu_custom_call.1} parent=35 // pred_check_branch
          %223 = sbr.rel (%p221) target = $region44
        $region43: #{tpu_custom_call.1} parent=35 // pred_region
          %224 = dma.done [#allocation6], 16
        $region44: #{tpu_custom_call.1} parent=35 // pred_fallthru
          _
        // Predicated region
        $region45: #{tpu_custom_call.1} parent=35 // pred_check
          %p225 = pneg %p87
        $region46: #{tpu_custom_call.1} parent=35 // pred_check_branch
          %227 = sbr.rel (%p225) target = $region48
        $region47: #{tpu_custom_call.1} parent=35 // pred_region
          %228 = dma.done [#allocation5], 16
        $region48: #{tpu_custom_call.1} parent=35 // pred_fallthru
          _
        // Predicated region
        $region49: #{tpu_custom_call.1} parent=35 // pred_check
          %p229 = pneg %p108
        $region50: #{tpu_custom_call.1} parent=35 // pred_check_branch
          %231 = sbr.rel (%p229) target = $region52
        $region51: #{tpu_custom_call.1} parent=35 // pred_region
          %232 = dma.done [#allocation10], 64
        $region52: #{tpu_custom_call.1} parent=35 // pred_fallthru
          _
        %233 = sfence
        %s234 = sand.u32 %s32, 1
        %s235 = scalar_lea.sflag [#allocation3], %s234
        %s236 = sand.u32 %s32, 1
        %s237 = smul.addr %s236, 128
        %s238 = scalar_lea.vmem [#allocation2], %s237
        %p239 = pneg %p45
        %p240 = pneg %p42
        %p241 = pneg %p66
        %p242 = pneg %p63
        %p243 = pneg %p87
        %p244 = pneg %p84
        %p245 = pneg %p108
        %p246 = pneg %p105
        %p247 = pneg %p134
        %p248 = pneg %p131
        %s249 = sand.u32 %s121, 1
        %s250 = scalar_lea.sflag [#allocation4], %s249
        %s251 = sand.u32 %s121, 1
        %s252 = smul.addr %s251, 32
        %s253 = scalar_lea.vmem [#allocation11], %s252
        %v254 = vld [vmem:[%s216] sm:$0xff]
        %v255 = vld [vmem:[%s216 + $0x8] sm:$0xff]
        %v256 = vld [vmem:[%s216 + $0x10] sm:$0xff]
        %v257 = vld [vmem:[%s216 + $0x18] sm:$0xff]
        %v258 = vld [vmem:[%s216 + $0x20] sm:$0xff]
        %v259 = vld [vmem:[%s216 + $0x28] sm:$0xff]
        %v260 = vld [vmem:[%s216 + $0x30] sm:$0xff]
        %v261 = vld [vmem:[%s216 + $0x38] sm:$0xff]
        %v262 = vld [vmem:[%s216 + $0x40] sm:$0xff]
        %v263 = vld [vmem:[%s216 + $0x48] sm:$0xff]
        %v264 = vld [vmem:[%s216 + $0x50] sm:$0xff]
        %v265 = vld [vmem:[%s216 + $0x58] sm:$0xff]
        %v266 = vld [vmem:[%s216 + $0x60] sm:$0xff]
        %v267 = vld [vmem:[%s216 + $0x68] sm:$0xff]
        %v268 = vld [vmem:[%s216 + $0x70] sm:$0xff]
        %v269 = vld [vmem:[%s216 + $0x78] sm:$0xff]
        %s270 = sld [smem:[#allocation7]]
        %v271 = vstv %s270
        %v272 = vmul.f32 %v254, %v271
        %v273 = vmul.f32 %v255, %v271
        %s274 = sld [smem:[#allocation8]]
        %v275 = vstv %s274
        %v276 = vadd.f32 %v272, %v275
        %v277 = vadd.f32 %v273, %v275
        %v278 = vmax.f32 %v276, 0.0
        %v279 = vmax.f32 %v277, 0.0
        %v282 = vcombine.high %v278, %v278
        %v284 = vunpack.c.l.s4 1983009808
        %v285 = vunpack.c.0.s8 %v284
        %v286 = vlaneseq
        %v287 = vshrl.u32 %v286, 7
        %v288 = vsub.s32 %v285, %v287
        %v289 = vrot.slane %v278, %v288
        %v291 = vunpack.c.l.s4 1983009808
        %v292 = vunpack.c.0.s8 %v291
        %v293 = vlaneseq
        %v294 = vshrl.u32 %v293, 7
        %v295 = vsub.s32 %v292, %v294
        %v296 = vrot.slane %v282, %v295
        %v297 = vcombine.high %v289, %v289
        %v298 = vcombine.high %v296, %v296
        %v299 = vcombine.high %v279, %v279
        %v301 = vunpack.c.l.s4 1983009808
        %v302 = vunpack.c.0.s8 %v301
        %v303 = vlaneseq
        %v304 = vshrl.u32 %v303, 7
        %v305 = vsub.s32 %v302, %v304
        %v306 = vrot.slane %v279, %v305
        %v308 = vunpack.c.l.s4 1983009808
        %v309 = vunpack.c.0.s8 %v308
        %v310 = vlaneseq
        %v311 = vshrl.u32 %v310, 7
        %v312 = vsub.s32 %v309, %v311
        %v313 = vrot.slane %v299, %v312
        %v314 = vcombine.high %v306, %v306
        %v315 = vcombine.high %v313, %v313
        %v324 = vrot.slane %v289, 7
        %v325 = vrot.slane %v324, 2
        %v326 = vrot.slane %v297, 7
        %v327 = vrot.slane %v326, 2
        %v328 = vrot.slane %v296, 7
        %v329 = vrot.slane %v328, 2
        %v330 = vrot.slane %v298, 7
        %v331 = vrot.slane %v330, 2
        %v332 = vrot.slane %v306, 7
        %v333 = vrot.slane %v332, 2
        %v334 = vrot.slane %v314, 7
        %v335 = vrot.slane %v334, 2
        %v336 = vrot.slane %v313, 7
        %v337 = vrot.slane %v336, 2
        %v338 = vrot.slane %v315, 7
        %v339 = vrot.slane %v338, 2
        %v348 = vadd.f32 %v289, %v325
        %v349 = vadd.f32 %v297, %v327
        %v350 = vadd.f32 %v296, %v329
        %v351 = vadd.f32 %v298, %v331
        %v352 = vadd.f32 %v306, %v333
        %v353 = vadd.f32 %v314, %v335
        %v354 = vadd.f32 %v313, %v337
        %v355 = vadd.f32 %v315, %v339
        %v364 = vlaneseq
        %v365 = vshrl.u32 %v364, 7
        %v366 = vsub.s32 0, %v365
        %v367 = vrot.slane %v348, %v366
        %v368 = vlaneseq
        %v369 = vshrl.u32 %v368, 7
        %v370 = vsub.s32 0, %v369
        %v371 = vrot.slane %v349, %v370
        %v372 = vlaneseq
        %v373 = vshrl.u32 %v372, 7
        %v374 = vsub.s32 0, %v373
        %v375 = vrot.slane %v350, %v374
        %v376 = vlaneseq
        %v377 = vshrl.u32 %v376, 7
        %v378 = vsub.s32 0, %v377
        %v379 = vrot.slane %v351, %v378
        %v380 = vlaneseq
        %v381 = vshrl.u32 %v380, 7
        %v382 = vsub.s32 0, %v381
        %v383 = vrot.slane %v352, %v382
        %v384 = vlaneseq
        %v385 = vshrl.u32 %v384, 7
        %v386 = vsub.s32 0, %v385
        %v387 = vrot.slane %v353, %v386
        %v388 = vlaneseq
        %v389 = vshrl.u32 %v388, 7
        %v390 = vsub.s32 0, %v389
        %v391 = vrot.slane %v354, %v390
        %v392 = vlaneseq
        %v393 = vshrl.u32 %v392, 7
        %v394 = vsub.s32 0, %v393
        %v395 = vrot.slane %v355, %v394
        %vm396 = vcmask 1041409
        %v397 = vsel %vm396, %v371, %v367
        %vm398 = vcmask 1042434
        %v399 = vsel %vm398, %v375, %v397
        %vm400 = vcmask 1043459
        %v401 = vsel %vm400, %v379, %v399
        %vm402 = vcmask 1044484
        %v403 = vsel %vm402, %v383, %v401
        %vm404 = vcmask 1045509
        %v405 = vsel %vm404, %v387, %v403
        %vm406 = vcmask 1046534
        %v407 = vsel %vm406, %v391, %v405
        %vm408 = vcmask 1047559
        %v409 = vsel %vm408, %v395, %v407
        %411 = vxpose.xlu0.b32.start [1/16] %v409, 128
        %412 = vxpose.xlu0.b32.cont [2/16] 0.0, 128
        %413 = vxpose.xlu0.b32.cont [3/16] 0.0, 128
        %414 = vxpose.xlu0.b32.cont [4/16] 0.0, 128
        %415 = vxpose.xlu0.b32.cont [5/16] 0.0, 128
        %416 = vxpose.xlu0.b32.cont [6/16] 0.0, 128
        %417 = vxpose.xlu0.b32.cont [7/16] 0.0, 128
        %418 = vxpose.xlu0.b32.cont [8/16] 0.0, 128
        %419 = vxpose.xlu0.b32.cont [9/16] 0.0, 128
        %420 = vxpose.xlu0.b32.cont [10/16] 0.0, 128
        %421 = vxpose.xlu0.b32.cont [11/16] 0.0, 128
        %422 = vxpose.xlu0.b32.cont [12/16] 0.0, 128
        %423 = vxpose.xlu0.b32.cont [13/16] 0.0, 128
        %424 = vxpose.xlu0.b32.cont [14/16] 0.0, 128
        %425 = vxpose.xlu0.b32.cont [15/16] 0.0, 128
        %426 = vxpose.xlu0.b32.end [16/16] 0.0, 128
        %v427 = vpop.trf.xlu0
        %v428 = vpop.trf.xlu0
        %v429 = vpop.trf.xlu0
        %v430 = vpop.trf.xlu0
        %v431 = vpop.trf.xlu0
        %v432 = vpop.trf.xlu0
        %v433 = vpop.trf.xlu0
        %v434 = vpop.trf.xlu0
        %v435 = vpop.trf.xlu0
        %v436 = vpop.trf.xlu0
        %v437 = vpop.trf.xlu0
        %v438 = vpop.trf.xlu0
        %v439 = vpop.trf.xlu0
        %v440 = vpop.trf.xlu0
        %v441 = vpop.trf.xlu0
        %v442 = vpop.trf.xlu0
        %v445 = vcombine.high %v427, %v427
        %v447 = vunpack.c.l.s4 1983009808
        %v448 = vunpack.c.0.s8 %v447
        %v449 = vlaneseq
        %v450 = vshrl.u32 %v449, 7
        %v451 = vsub.s32 %v448, %v450
        %v452 = vrot.slane %v427, %v451
        %v454 = vunpack.c.l.s4 1983009808
        %v455 = vunpack.c.0.s8 %v454
        %v456 = vlaneseq
        %v457 = vshrl.u32 %v456, 7
        %v458 = vsub.s32 %v455, %v457
        %v459 = vrot.slane %v445, %v458
        %v460 = vcombine.high %v452, %v452
        %v461 = vcombine.high %v459, %v459
        %v462 = vcombine.high %v428, %v428
        %v464 = vunpack.c.l.s4 1983009808
        %v465 = vunpack.c.0.s8 %v464
        %v466 = vlaneseq
        %v467 = vshrl.u32 %v466, 7
        %v468 = vsub.s32 %v465, %v467
        %v469 = vrot.slane %v428, %v468
        %v471 = vunpack.c.l.s4 1983009808
        %v472 = vunpack.c.0.s8 %v471
        %v473 = vlaneseq
        %v474 = vshrl.u32 %v473, 7
        %v475 = vsub.s32 %v472, %v474
        %v476 = vrot.slane %v462, %v475
        %v477 = vcombine.high %v469, %v469
        %v478 = vcombine.high %v476, %v476
        %v487 = vrot.slane %v452, 7
        %v488 = vrot.slane %v487, 2
        %v489 = vrot.slane %v460, 7
        %v490 = vrot.slane %v489, 2
        %v491 = vrot.slane %v459, 7
        %v492 = vrot.slane %v491, 2
        %v493 = vrot.slane %v461, 7
        %v494 = vrot.slane %v493, 2
        %v495 = vrot.slane %v469, 7
        %v496 = vrot.slane %v495, 2
        %v497 = vrot.slane %v477, 7
        %v498 = vrot.slane %v497, 2
        %v499 = vrot.slane %v476, 7
        %v500 = vrot.slane %v499, 2
        %v501 = vrot.slane %v478, 7
        %v502 = vrot.slane %v501, 2
        %v511 = vadd.f32 %v452, %v488
        %v512 = vadd.f32 %v460, %v490
        %v513 = vadd.f32 %v459, %v492
        %v514 = vadd.f32 %v461, %v494
        %v515 = vadd.f32 %v469, %v496
        %v516 = vadd.f32 %v477, %v498
        %v517 = vadd.f32 %v476, %v500
        %v518 = vadd.f32 %v478, %v502
        %v519 = vmul.f32 %v511, 0.25
        %v520 = vmul.f32 %v512, 0.25
        %v521 = vmul.f32 %v513, 0.25
        %v522 = vmul.f32 %v514, 0.25
        %v523 = vmul.f32 %v515, 0.25
        %v524 = vmul.f32 %v516, 0.25
        %v525 = vmul.f32 %v517, 0.25
        %v526 = vmul.f32 %v518, 0.25
        %s527 = sld [smem:[#allocation7 + $0x1]]
        %v528 = vstv %s527
        %v529 = vmul.f32 %v256, %v528
        %v530 = vmul.f32 %v257, %v528
        %s531 = sld [smem:[#allocation8 + $0x1]]
        %v532 = vstv %s531
        %v533 = vadd.f32 %v529, %v532
        %v534 = vadd.f32 %v530, %v532
        %v535 = vmax.f32 %v533, 0.0
        %v536 = vmax.f32 %v534, 0.0
        %v539 = vcombine.high %v535, %v535
        %v541 = vunpack.c.l.s4 1983009808
        %v542 = vunpack.c.0.s8 %v541
        %v543 = vlaneseq
        %v544 = vshrl.u32 %v543, 7
        %v545 = vsub.s32 %v542, %v544
        %v546 = vrot.slane %v535, %v545
        %v548 = vunpack.c.l.s4 1983009808
        %v549 = vunpack.c.0.s8 %v548
        %v550 = vlaneseq
        %v551 = vshrl.u32 %v550, 7
        %v552 = vsub.s32 %v549, %v551
        %v553 = vrot.slane %v539, %v552
        %v554 = vcombine.high %v546, %v546
        %v555 = vcombine.high %v553, %v553
        %v556 = vcombine.high %v536, %v536
        %v558 = vunpack.c.l.s4 1983009808
        %v559 = vunpack.c.0.s8 %v558
        %v560 = vlaneseq
        %v561 = vshrl.u32 %v560, 7
        %v562 = vsub.s32 %v559, %v561
        %v563 = vrot.slane %v536, %v562
        %v565 = vunpack.c.l.s4 1983009808
        %v566 = vunpack.c.0.s8 %v565
        %v567 = vlaneseq
        %v568 = vshrl.u32 %v567, 7
        %v569 = vsub.s32 %v566, %v568
        %v570 = vrot.slane %v556, %v569
        %v571 = vcombine.high %v563, %v563
        %v572 = vcombine.high %v570, %v570
        %v581 = vrot.slane %v546, 7
        %v582 = vrot.slane %v581, 2
        %v583 = vrot.slane %v554, 7
        %v584 = vrot.slane %v583, 2
        %v585 = vrot.slane %v553, 7
        %v586 = vrot.slane %v585, 2
        %v587 = vrot.slane %v555, 7
        %v588 = vrot.slane %v587, 2
        %v589 = vrot.slane %v563, 7
        %v590 = vrot.slane %v589, 2
        %v591 = vrot.slane %v571, 7
        %v592 = vrot.slane %v591, 2
        %v593 = vrot.slane %v570, 7
        %v594 = vrot.slane %v593, 2
        %v595 = vrot.slane %v572, 7
        %v596 = vrot.slane %v595, 2
        %v605 = vadd.f32 %v546, %v582
        %v606 = vadd.f32 %v554, %v584
        %v607 = vadd.f32 %v553, %v586
        %v608 = vadd.f32 %v555, %v588
        %v609 = vadd.f32 %v563, %v590
        %v610 = vadd.f32 %v571, %v592
        %v611 = vadd.f32 %v570, %v594
        %v612 = vadd.f32 %v572, %v596
        %v621 = vlaneseq
        %v622 = vshrl.u32 %v621, 7
        %v623 = vsub.s32 0, %v622
        %v624 = vrot.slane %v605, %v623
        %v625 = vlaneseq
        %v626 = vshrl.u32 %v625, 7
        %v627 = vsub.s32 0, %v626
        %v628 = vrot.slane %v606, %v627
        %v629 = vlaneseq
        %v630 = vshrl.u32 %v629, 7
        %v631 = vsub.s32 0, %v630
        %v632 = vrot.slane %v607, %v631
        %v633 = vlaneseq
        %v634 = vshrl.u32 %v633, 7
        %v635 = vsub.s32 0, %v634
        %v636 = vrot.slane %v608, %v635
        %v637 = vlaneseq
        %v638 = vshrl.u32 %v637, 7
        %v639 = vsub.s32 0, %v638
        %v640 = vrot.slane %v609, %v639
        %v641 = vlaneseq
        %v642 = vshrl.u32 %v641, 7
        %v643 = vsub.s32 0, %v642
        %v644 = vrot.slane %v610, %v643
        %v645 = vlaneseq
        %v646 = vshrl.u32 %v645, 7
        %v647 = vsub.s32 0, %v646
        %v648 = vrot.slane %v611, %v647
        %v649 = vlaneseq
        %v650 = vshrl.u32 %v649, 7
        %v651 = vsub.s32 0, %v650
        %v652 = vrot.slane %v612, %v651
        %v653 = vsel %vm396, %v628, %v624
        %v654 = vsel %vm398, %v632, %v653
        %v655 = vsel %vm400, %v636, %v654
        %v656 = vsel %vm402, %v640, %v655
        %v657 = vsel %vm404, %v644, %v656
        %v658 = vsel %vm406, %v648, %v657
        %v659 = vsel %vm408, %v652, %v658
        %661 = vxpose.xlu0.b32.start [1/16] %v659, 128
        %662 = vxpose.xlu0.b32.cont [2/16] 0.0, 128
        %663 = vxpose.xlu0.b32.cont [3/16] 0.0, 128
        %664 = vxpose.xlu0.b32.cont [4/16] 0.0, 128
        %665 = vxpose.xlu0.b32.cont [5/16] 0.0, 128
        %666 = vxpose.xlu0.b32.cont [6/16] 0.0, 128
        %667 = vxpose.xlu0.b32.cont [7/16] 0.0, 128
        %668 = vxpose.xlu0.b32.cont [8/16] 0.0, 128
        %669 = vxpose.xlu0.b32.cont [9/16] 0.0, 128
        %670 = vxpose.xlu0.b32.cont [10/16] 0.0, 128
        %671 = vxpose.xlu0.b32.cont [11/16] 0.0, 128
        %672 = vxpose.xlu0.b32.cont [12/16] 0.0, 128
        %673 = vxpose.xlu0.b32.cont [13/16] 0.0, 128
        %674 = vxpose.xlu0.b32.cont [14/16] 0.0, 128
        %675 = vxpose.xlu0.b32.cont [15/16] 0.0, 128
        %676 = vxpose.xlu0.b32.end [16/16] 0.0, 128
        %v677 = vpop.trf.xlu0
        %v678 = vpop.trf.xlu0
        %v679 = vpop.trf.xlu0
        %v680 = vpop.trf.xlu0
        %v681 = vpop.trf.xlu0
        %v682 = vpop.trf.xlu0
        %v683 = vpop.trf.xlu0
        %v684 = vpop.trf.xlu0
        %v685 = vpop.trf.xlu0
        %v686 = vpop.trf.xlu0
        %v687 = vpop.trf.xlu0
        %v688 = vpop.trf.xlu0
        %v689 = vpop.trf.xlu0
        %v690 = vpop.trf.xlu0
        %v691 = vpop.trf.xlu0
        %v692 = vpop.trf.xlu0
        %v695 = vcombine.high %v677, %v677
        %v697 = vunpack.c.l.s4 1983009808
        %v698 = vunpack.c.0.s8 %v697
        %v699 = vlaneseq
        %v700 = vshrl.u32 %v699, 7
        %v701 = vsub.s32 %v698, %v700
        %v702 = vrot.slane %v677, %v701
        %v704 = vunpack.c.l.s4 1983009808
        %v705 = vunpack.c.0.s8 %v704
        %v706 = vlaneseq
        %v707 = vshrl.u32 %v706, 7
        %v708 = vsub.s32 %v705, %v707
        %v709 = vrot.slane %v695, %v708
        %v710 = vcombine.high %v702, %v702
        %v711 = vcombine.high %v709, %v709
        %v712 = vcombine.high %v678, %v678
        %v714 = vunpack.c.l.s4 1983009808
        %v715 = vunpack.c.0.s8 %v714
        %v716 = vlaneseq
        %v717 = vshrl.u32 %v716, 7
        %v718 = vsub.s32 %v715, %v717
        %v719 = vrot.slane %v678, %v718
        %v721 = vunpack.c.l.s4 1983009808
        %v722 = vunpack.c.0.s8 %v721
        %v723 = vlaneseq
        %v724 = vshrl.u32 %v723, 7
        %v725 = vsub.s32 %v722, %v724
        %v726 = vrot.slane %v712, %v725
        %v727 = vcombine.high %v719, %v719
        %v728 = vcombine.high %v726, %v726
        %v737 = vrot.slane %v702, 7
        %v738 = vrot.slane %v737, 2
        %v739 = vrot.slane %v710, 7
        %v740 = vrot.slane %v739, 2
        %v741 = vrot.slane %v709, 7
        %v742 = vrot.slane %v741, 2
        %v743 = vrot.slane %v711, 7
        %v744 = vrot.slane %v743, 2
        %v745 = vrot.slane %v719, 7
        %v746 = vrot.slane %v745, 2
        %v747 = vrot.slane %v727, 7
        %v748 = vrot.slane %v747, 2
        %v749 = vrot.slane %v726, 7
        %v750 = vrot.slane %v749, 2
        %v751 = vrot.slane %v728, 7
        %v752 = vrot.slane %v751, 2
        %v761 = vadd.f32 %v702, %v738
        %v762 = vadd.f32 %v710, %v740
        %v763 = vadd.f32 %v709, %v742
        %v764 = vadd.f32 %v711, %v744
        %v765 = vadd.f32 %v719, %v746
        %v766 = vadd.f32 %v727, %v748
        %v767 = vadd.f32 %v726, %v750
        %v768 = vadd.f32 %v728, %v752
        %v769 = vmul.f32 %v761, 0.25
        %v770 = vmul.f32 %v762, 0.25
        %v771 = vmul.f32 %v763, 0.25
        %v772 = vmul.f32 %v764, 0.25
        %v773 = vmul.f32 %v765, 0.25
        %v774 = vmul.f32 %v766, 0.25
        %v775 = vmul.f32 %v767, 0.25
        %v776 = vmul.f32 %v768, 0.25
        %s777 = sld [smem:[#allocation7 + $0x2]]
        %v778 = vstv %s777
        %v779 = vmul.f32 %v258, %v778
        %v780 = vmul.f32 %v259, %v778
        %s781 = sld [smem:[#allocation8 + $0x2]]
        %v782 = vstv %s781
        %v783 = vadd.f32 %v779, %v782
        %v784 = vadd.f32 %v780, %v782
        %v785 = vmax.f32 %v783, 0.0
        %v786 = vmax.f32 %v784, 0.0
        %v789 = vcombine.high %v785, %v785
        %v791 = vunpack.c.l.s4 1983009808
        %v792 = vunpack.c.0.s8 %v791
        %v793 = vlaneseq
        %v794 = vshrl.u32 %v793, 7
        %v795 = vsub.s32 %v792, %v794
        %v796 = vrot.slane %v785, %v795
        %v798 = vunpack.c.l.s4 1983009808
        %v799 = vunpack.c.0.s8 %v798
        %v800 = vlaneseq
        %v801 = vshrl.u32 %v800, 7
        %v802 = vsub.s32 %v799, %v801
        %v803 = vrot.slane %v789, %v802
        %v804 = vcombine.high %v796, %v796
        %v805 = vcombine.high %v803, %v803
        %v806 = vcombine.high %v786, %v786
        %v808 = vunpack.c.l.s4 1983009808
        %v809 = vunpack.c.0.s8 %v808
        %v810 = vlaneseq
        %v811 = vshrl.u32 %v810, 7
        %v812 = vsub.s32 %v809, %v811
        %v813 = vrot.slane %v786, %v812
        %v815 = vunpack.c.l.s4 1983009808
        %v816 = vunpack.c.0.s8 %v815
        %v817 = vlaneseq
        %v818 = vshrl.u32 %v817, 7
        %v819 = vsub.s32 %v816, %v818
        %v820 = vrot.slane %v806, %v819
        %v821 = vcombine.high %v813, %v813
        %v822 = vcombine.high %v820, %v820
        %v831 = vrot.slane %v796, 7
        %v832 = vrot.slane %v831, 2
        %v833 = vrot.slane %v804, 7
        %v834 = vrot.slane %v833, 2
        %v835 = vrot.slane %v803, 7
        %v836 = vrot.slane %v835, 2
        %v837 = vrot.slane %v805, 7
        %v838 = vrot.slane %v837, 2
        %v839 = vrot.slane %v813, 7
        %v840 = vrot.slane %v839, 2
        %v841 = vrot.slane %v821, 7
        %v842 = vrot.slane %v841, 2
        %v843 = vrot.slane %v820, 7
        %v844 = vrot.slane %v843, 2
        %v845 = vrot.slane %v822, 7
        %v846 = vrot.slane %v845, 2
        %v855 = vadd.f32 %v796, %v832
        %v856 = vadd.f32 %v804, %v834
        %v857 = vadd.f32 %v803, %v836
        %v858 = vadd.f32 %v805, %v838
        %v859 = vadd.f32 %v813, %v840
        %v860 = vadd.f32 %v821, %v842
        %v861 = vadd.f32 %v820, %v844
        %v862 = vadd.f32 %v822, %v846
        %v871 = vlaneseq
        %v872 = vshrl.u32 %v871, 7
        %v873 = vsub.s32 0, %v872
        %v874 = vrot.slane %v855, %v873
        %v875 = vlaneseq
        %v876 = vshrl.u32 %v875, 7
        %v877 = vsub.s32 0, %v876
        %v878 = vrot.slane %v856, %v877
        %v879 = vlaneseq
        %v880 = vshrl.u32 %v879, 7
        %v881 = vsub.s32 0, %v880
        %v882 = vrot.slane %v857, %v881
        %v883 = vlaneseq
        %v884 = vshrl.u32 %v883, 7
        %v885 = vsub.s32 0, %v884
        %v886 = vrot.slane %v858, %v885
        %v887 = vlaneseq
        %v888 = vshrl.u32 %v887, 7
        %v889 = vsub.s32 0, %v888
        %v890 = vrot.slane %v859, %v889
        %v891 = vlaneseq
        %v892 = vshrl.u32 %v891, 7
        %v893 = vsub.s32 0, %v892
        %v894 = vrot.slane %v860, %v893
        %v895 = vlaneseq
        %v896 = vshrl.u32 %v895, 7
        %v897 = vsub.s32 0, %v896
        %v898 = vrot.slane %v861, %v897
        %v899 = vlaneseq
        %v900 = vshrl.u32 %v899, 7
        %v901 = vsub.s32 0, %v900
        %v902 = vrot.slane %v862, %v901
        %v903 = vsel %vm396, %v878, %v874
        %v904 = vsel %vm398, %v882, %v903
        %v905 = vsel %vm400, %v886, %v904
        %v906 = vsel %vm402, %v890, %v905
        %v907 = vsel %vm404, %v894, %v906
        %v908 = vsel %vm406, %v898, %v907
        %v909 = vsel %vm408, %v902, %v908
        %911 = vxpose.xlu0.b32.start [1/16] %v909, 128
        %912 = vxpose.xlu0.b32.cont [2/16] 0.0, 128
        %913 = vxpose.xlu0.b32.cont [3/16] 0.0, 128
        %914 = vxpose.xlu0.b32.cont [4/16] 0.0, 128
        %915 = vxpose.xlu0.b32.cont [5/16] 0.0, 128
        %916 = vxpose.xlu0.b32.cont [6/16] 0.0, 128
        %917 = vxpose.xlu0.b32.cont [7/16] 0.0, 128
        %918 = vxpose.xlu0.b32.cont [8/16] 0.0, 128
        %919 = vxpose.xlu0.b32.cont [9/16] 0.0, 128
        %920 = vxpose.xlu0.b32.cont [10/16] 0.0, 128
        %921 = vxpose.xlu0.b32.cont [11/16] 0.0, 128
        %922 = vxpose.xlu0.b32.cont [12/16] 0.0, 128
        %923 = vxpose.xlu0.b32.cont [13/16] 0.0, 128
        %924 = vxpose.xlu0.b32.cont [14/16] 0.0, 128
        %925 = vxpose.xlu0.b32.cont [15/16] 0.0, 128
        %926 = vxpose.xlu0.b32.end [16/16] 0.0, 128
        %v927 = vpop.trf.xlu0
        %v928 = vpop.trf.xlu0
        %v929 = vpop.trf.xlu0
        %v930 = vpop.trf.xlu0
        %v931 = vpop.trf.xlu0
        %v932 = vpop.trf.xlu0
        %v933 = vpop.trf.xlu0
        %v934 = vpop.trf.xlu0
        %v935 = vpop.trf.xlu0
        %v936 = vpop.trf.xlu0
        %v937 = vpop.trf.xlu0
        %v938 = vpop.trf.xlu0
        %v939 = vpop.trf.xlu0
        %v940 = vpop.trf.xlu0
        %v941 = vpop.trf.xlu0
        %v942 = vpop.trf.xlu0
        %v945 = vcombine.high %v927, %v927
        %v947 = vunpack.c.l.s4 1983009808
        %v948 = vunpack.c.0.s8 %v947
        %v949 = vlaneseq
        %v950 = vshrl.u32 %v949, 7
        %v951 = vsub.s32 %v948, %v950
        %v952 = vrot.slane %v927, %v951
        %v954 = vunpack.c.l.s4 1983009808
        %v955 = vunpack.c.0.s8 %v954
        %v956 = vlaneseq
        %v957 = vshrl.u32 %v956, 7
        %v958 = vsub.s32 %v955, %v957
        %v959 = vrot.slane %v945, %v958
        %v960 = vcombine.high %v952, %v952
        %v961 = vcombine.high %v959, %v959
        %v962 = vcombine.high %v928, %v928
        %v964 = vunpack.c.l.s4 1983009808
        %v965 = vunpack.c.0.s8 %v964
        %v966 = vlaneseq
        %v967 = vshrl.u32 %v966, 7
        %v968 = vsub.s32 %v965, %v967
        %v969 = vrot.slane %v928, %v968
        %v971 = vunpack.c.l.s4 1983009808
        %v972 = vunpack.c.0.s8 %v971
        %v973 = vlaneseq
        %v974 = vshrl.u32 %v973, 7
        %v975 = vsub.s32 %v972, %v974
        %v976 = vrot.slane %v962, %v975
        %v977 = vcombine.high %v969, %v969
        %v978 = vcombine.high %v976, %v976
        %v987 = vrot.slane %v952, 7
        %v988 = vrot.slane %v987, 2
        %v989 = vrot.slane %v960, 7
        %v990 = vrot.slane %v989, 2
        %v991 = vrot.slane %v959, 7
        %v992 = vrot.slane %v991, 2
        %v993 = vrot.slane %v961, 7
        %v994 = vrot.slane %v993, 2
        %v995 = vrot.slane %v969, 7
        %v996 = vrot.slane %v995, 2
        %v997 = vrot.slane %v977, 7
        %v998 = vrot.slane %v997, 2
        %v999 = vrot.slane %v976, 7
        %v1000 = vrot.slane %v999, 2
        %v1001 = vrot.slane %v978, 7
        %v1002 = vrot.slane %v1001, 2
        %v1011 = vadd.f32 %v952, %v988
        %v1012 = vadd.f32 %v960, %v990
        %v1013 = vadd.f32 %v959, %v992
        %v1014 = vadd.f32 %v961, %v994
        %v1015 = vadd.f32 %v969, %v996
        %v1016 = vadd.f32 %v977, %v998
        %v1017 = vadd.f32 %v976, %v1000
        %v1018 = vadd.f32 %v978, %v1002
        %v1019 = vmul.f32 %v1011, 0.25
        %v1020 = vmul.f32 %v1012, 0.25
        %v1021 = vmul.f32 %v1013, 0.25
        %v1022 = vmul.f32 %v1014, 0.25
        %v1023 = vmul.f32 %v1015, 0.25
        %v1024 = vmul.f32 %v1016, 0.25
        %v1025 = vmul.f32 %v1017, 0.25
        %v1026 = vmul.f32 %v1018, 0.25
        %s1027 = sld [smem:[#allocation7 + $0x3]]
        %v1028 = vstv %s1027
        %v1029 = vmul.f32 %v260, %v1028
        %v1030 = vmul.f32 %v261, %v1028
        %s1031 = sld [smem:[#allocation8 + $0x3]]
        %v1032 = vstv %s1031
        %v1033 = vadd.f32 %v1029, %v1032
        %v1034 = vadd.f32 %v1030, %v1032
        %v1035 = vmax.f32 %v1033, 0.0
        %v1036 = vmax.f32 %v1034, 0.0
        %v1039 = vcombine.high %v1035, %v1035
        %v1041 = vunpack.c.l.s4 1983009808
        %v1042 = vunpack.c.0.s8 %v1041
        %v1043 = vlaneseq
        %v1044 = vshrl.u32 %v1043, 7
        %v1045 = vsub.s32 %v1042, %v1044
        %v1046 = vrot.slane %v1035, %v1045
        %v1048 = vunpack.c.l.s4 1983009808
        %v1049 = vunpack.c.0.s8 %v1048
        %v1050 = vlaneseq
        %v1051 = vshrl.u32 %v1050, 7
        %v1052 = vsub.s32 %v1049, %v1051
        %v1053 = vrot.slane %v1039, %v1052
        %v1054 = vcombine.high %v1046, %v1046
        %v1055 = vcombine.high %v1053, %v1053
        %v1056 = vcombine.high %v1036, %v1036
        %v1058 = vunpack.c.l.s4 1983009808
        %v1059 = vunpack.c.0.s8 %v1058
        %v1060 = vlaneseq
        %v1061 = vshrl.u32 %v1060, 7
        %v1062 = vsub.s32 %v1059, %v1061
        %v1063 = vrot.slane %v1036, %v1062
        %v1065 = vunpack.c.l.s4 1983009808
        %v1066 = vunpack.c.0.s8 %v1065
        %v1067 = vlaneseq
        %v1068 = vshrl.u32 %v1067, 7
        %v1069 = vsub.s32 %v1066, %v1068
        %v1070 = vrot.slane %v1056, %v1069
        %v1071 = vcombine.high %v1063, %v1063
        %v1072 = vcombine.high %v1070, %v1070
        %v1081 = vrot.slane %v1046, 7
        %v1082 = vrot.slane %v1081, 2
        %v1083 = vrot.slane %v1054, 7
        %v1084 = vrot.slane %v1083, 2
        %v1085 = vrot.slane %v1053, 7
        %v1086 = vrot.slane %v1085, 2
        %v1087 = vrot.slane %v1055, 7
        %v1088 = vrot.slane %v1087, 2
        %v1089 = vrot.slane %v1063, 7
        %v1090 = vrot.slane %v1089, 2
        %v1091 = vrot.slane %v1071, 7
        %v1092 = vrot.slane %v1091, 2
        %v1093 = vrot.slane %v1070, 7
        %v1094 = vrot.slane %v1093, 2
        %v1095 = vrot.slane %v1072, 7
        %v1096 = vrot.slane %v1095, 2
        %v1105 = vadd.f32 %v1046, %v1082
        %v1106 = vadd.f32 %v1054, %v1084
        %v1107 = vadd.f32 %v1053, %v1086
        %v1108 = vadd.f32 %v1055, %v1088
        %v1109 = vadd.f32 %v1063, %v1090
        %v1110 = vadd.f32 %v1071, %v1092
        %v1111 = vadd.f32 %v1070, %v1094
        %v1112 = vadd.f32 %v1072, %v1096
        %v1121 = vlaneseq
        %v1122 = vshrl.u32 %v1121, 7
        %v1123 = vsub.s32 0, %v1122
        %v1124 = vrot.slane %v1105, %v1123
        %v1125 = vlaneseq
        %v1126 = vshrl.u32 %v1125, 7
        %v1127 = vsub.s32 0, %v1126
        %v1128 = vrot.slane %v1106, %v1127
        %v1129 = vlaneseq
        %v1130 = vshrl.u32 %v1129, 7
        %v1131 = vsub.s32 0, %v1130
        %v1132 = vrot.slane %v1107, %v1131
        %v1133 = vlaneseq
        %v1134 = vshrl.u32 %v1133, 7
        %v1135 = vsub.s32 0, %v1134
        %v1136 = vrot.slane %v1108, %v1135
        %v1137 = vlaneseq
        %v1138 = vshrl.u32 %v1137, 7
        %v1139 = vsub.s32 0, %v1138
        %v1140 = vrot.slane %v1109, %v1139
        %v1141 = vlaneseq
        %v1142 = vshrl.u32 %v1141, 7
        %v1143 = vsub.s32 0, %v1142
        %v1144 = vrot.slane %v1110, %v1143
        %v1145 = vlaneseq
        %v1146 = vshrl.u32 %v1145, 7
        %v1147 = vsub.s32 0, %v1146
        %v1148 = vrot.slane %v1111, %v1147
        %v1149 = vlaneseq
        %v1150 = vshrl.u32 %v1149, 7
        %v1151 = vsub.s32 0, %v1150
        %v1152 = vrot.slane %v1112, %v1151
        %v1153 = vsel %vm396, %v1128, %v1124
        %v1154 = vsel %vm398, %v1132, %v1153
        %v1155 = vsel %vm400, %v1136, %v1154
        %v1156 = vsel %vm402, %v1140, %v1155
        %v1157 = vsel %vm404, %v1144, %v1156
        %v1158 = vsel %vm406, %v1148, %v1157
        %v1159 = vsel %vm408, %v1152, %v1158
        %1161 = vxpose.xlu0.b32.start [1/16] %v1159, 128
        %1162 = vxpose.xlu0.b32.cont [2/16] 0.0, 128
        %1163 = vxpose.xlu0.b32.cont [3/16] 0.0, 128
        %1164 = vxpose.xlu0.b32.cont [4/16] 0.0, 128
        %1165 = vxpose.xlu0.b32.cont [5/16] 0.0, 128
        %1166 = vxpose.xlu0.b32.cont [6/16] 0.0, 128
        %1167 = vxpose.xlu0.b32.cont [7/16] 0.0, 128
        %1168 = vxpose.xlu0.b32.cont [8/16] 0.0, 128
        %1169 = vxpose.xlu0.b32.cont [9/16] 0.0, 128
        %1170 = vxpose.xlu0.b32.cont [10/16] 0.0, 128
        %1171 = vxpose.xlu0.b32.cont [11/16] 0.0, 128
        %1172 = vxpose.xlu0.b32.cont [12/16] 0.0, 128
        %1173 = vxpose.xlu0.b32.cont [13/16] 0.0, 128
        %1174 = vxpose.xlu0.b32.cont [14/16] 0.0, 128
        %1175 = vxpose.xlu0.b32.cont [15/16] 0.0, 128
        %1176 = vxpose.xlu0.b32.end [16/16] 0.0, 128
        %v1177 = vpop.trf.xlu0
        %v1178 = vpop.trf.xlu0
        %v1179 = vpop.trf.xlu0
        %v1180 = vpop.trf.xlu0
        %v1181 = vpop.trf.xlu0
        %v1182 = vpop.trf.xlu0
        %v1183 = vpop.trf.xlu0
        %v1184 = vpop.trf.xlu0
        %v1185 = vpop.trf.xlu0
        %v1186 = vpop.trf.xlu0
        %v1187 = vpop.trf.xlu0
        %v1188 = vpop.trf.xlu0
        %v1189 = vpop.trf.xlu0
        %v1190 = vpop.trf.xlu0
        %v1191 = vpop.trf.xlu0
        %v1192 = vpop.trf.xlu0
        %v1195 = vcombine.high %v1177, %v1177
        %v1197 = vunpack.c.l.s4 1983009808
        %v1198 = vunpack.c.0.s8 %v1197
        %v1199 = vlaneseq
        %v1200 = vshrl.u32 %v1199, 7
        %v1201 = vsub.s32 %v1198, %v1200
        %v1202 = vrot.slane %v1177, %v1201
        %v1204 = vunpack.c.l.s4 1983009808
        %v1205 = vunpack.c.0.s8 %v1204
        %v1206 = vlaneseq
        %v1207 = vshrl.u32 %v1206, 7
        %v1208 = vsub.s32 %v1205, %v1207
        %v1209 = vrot.slane %v1195, %v1208
        %v1210 = vcombine.high %v1202, %v1202
        %v1211 = vcombine.high %v1209, %v1209
        %v1212 = vcombine.high %v1178, %v1178
        %v1214 = vunpack.c.l.s4 1983009808
        %v1215 = vunpack.c.0.s8 %v1214
        %v1216 = vlaneseq
        %v1217 = vshrl.u32 %v1216, 7
        %v1218 = vsub.s32 %v1215, %v1217
        %v1219 = vrot.slane %v1178, %v1218
        %v1221 = vunpack.c.l.s4 1983009808
        %v1222 = vunpack.c.0.s8 %v1221
        %v1223 = vlaneseq
        %v1224 = vshrl.u32 %v1223, 7
        %v1225 = vsub.s32 %v1222, %v1224
        %v1226 = vrot.slane %v1212, %v1225
        %v1227 = vcombine.high %v1219, %v1219
        %v1228 = vcombine.high %v1226, %v1226
        %v1237 = vrot.slane %v1202, 7
        %v1238 = vrot.slane %v1237, 2
        %v1239 = vrot.slane %v1210, 7
        %v1240 = vrot.slane %v1239, 2
        %v1241 = vrot.slane %v1209, 7
        %v1242 = vrot.slane %v1241, 2
        %v1243 = vrot.slane %v1211, 7
        %v1244 = vrot.slane %v1243, 2
        %v1245 = vrot.slane %v1219, 7
        %v1246 = vrot.slane %v1245, 2
        %v1247 = vrot.slane %v1227, 7
        %v1248 = vrot.slane %v1247, 2
        %v1249 = vrot.slane %v1226, 7
        %v1250 = vrot.slane %v1249, 2
        %v1251 = vrot.slane %v1228, 7
        %v1252 = vrot.slane %v1251, 2
        %v1261 = vadd.f32 %v1202, %v1238
        %v1262 = vadd.f32 %v1210, %v1240
        %v1263 = vadd.f32 %v1209, %v1242
        %v1264 = vadd.f32 %v1211, %v1244
        %v1265 = vadd.f32 %v1219, %v1246
        %v1266 = vadd.f32 %v1227, %v1248
        %v1267 = vadd.f32 %v1226, %v1250
        %v1268 = vadd.f32 %v1228, %v1252
        %v1269 = vmul.f32 %v1261, 0.25
        %v1270 = vmul.f32 %v1262, 0.25
        %v1271 = vmul.f32 %v1263, 0.25
        %v1272 = vmul.f32 %v1264, 0.25
        %v1273 = vmul.f32 %v1265, 0.25
        %v1274 = vmul.f32 %v1266, 0.25
        %v1275 = vmul.f32 %v1267, 0.25
        %v1276 = vmul.f32 %v1268, 0.25
        %s1277 = sld [smem:[#allocation7 + $0x4]]
        %v1278 = vstv %s1277
        %v1279 = vmul.f32 %v262, %v1278
        %v1280 = vmul.f32 %v263, %v1278
        %s1281 = sld [smem:[#allocation8 + $0x4]]
        %v1282 = vstv %s1281
        %v1283 = vadd.f32 %v1279, %v1282
        %v1284 = vadd.f32 %v1280, %v1282
        %v1285 = vmax.f32 %v1283, 0.0
        %v1286 = vmax.f32 %v1284, 0.0
        %v1289 = vcombine.high %v1285, %v1285
        %v1291 = vunpack.c.l.s4 1983009808
        %v1292 = vunpack.c.0.s8 %v1291
        %v1293 = vlaneseq
        %v1294 = vshrl.u32 %v1293, 7
        %v1295 = vsub.s32 %v1292, %v1294
        %v1296 = vrot.slane %v1285, %v1295
        %v1298 = vunpack.c.l.s4 1983009808
        %v1299 = vunpack.c.0.s8 %v1298
        %v1300 = vlaneseq
        %v1301 = vshrl.u32 %v1300, 7
        %v1302 = vsub.s32 %v1299, %v1301
        %v1303 = vrot.slane %v1289, %v1302
        %v1304 = vcombine.high %v1296, %v1296
        %v1305 = vcombine.high %v1303, %v1303
        %v1306 = vcombine.high %v1286, %v1286
        %v1308 = vunpack.c.l.s4 1983009808
        %v1309 = vunpack.c.0.s8 %v1308
        %v1310 = vlaneseq
        %v1311 = vshrl.u32 %v1310, 7
        %v1312 = vsub.s32 %v1309, %v1311
        %v1313 = vrot.slane %v1286, %v1312
        %v1315 = vunpack.c.l.s4 1983009808
        %v1316 = vunpack.c.0.s8 %v1315
        %v1317 = vlaneseq
        %v1318 = vshrl.u32 %v1317, 7
        %v1319 = vsub.s32 %v1316, %v1318
        %v1320 = vrot.slane %v1306, %v1319
        %v1321 = vcombine.high %v1313, %v1313
        %v1322 = vcombine.high %v1320, %v1320
        %v1331 = vrot.slane %v1296, 7
        %v1332 = vrot.slane %v1331, 2
        %v1333 = vrot.slane %v1304, 7
        %v1334 = vrot.slane %v1333, 2
        %v1335 = vrot.slane %v1303, 7
        %v1336 = vrot.slane %v1335, 2
        %v1337 = vrot.slane %v1305, 7
        %v1338 = vrot.slane %v1337, 2
        %v1339 = vrot.slane %v1313, 7
        %v1340 = vrot.slane %v1339, 2
        %v1341 = vrot.slane %v1321, 7
        %v1342 = vrot.slane %v1341, 2
        %v1343 = vrot.slane %v1320, 7
        %v1344 = vrot.slane %v1343, 2
        %v1345 = vrot.slane %v1322, 7
        %v1346 = vrot.slane %v1345, 2
        %v1355 = vadd.f32 %v1296, %v1332
        %v1356 = vadd.f32 %v1304, %v1334
        %v1357 = vadd.f32 %v1303, %v1336
        %v1358 = vadd.f32 %v1305, %v1338
        %v1359 = vadd.f32 %v1313, %v1340
        %v1360 = vadd.f32 %v1321, %v1342
        %v1361 = vadd.f32 %v1320, %v1344
        %v1362 = vadd.f32 %v1322, %v1346
        %v1371 = vlaneseq
        %v1372 = vshrl.u32 %v1371, 7
        %v1373 = vsub.s32 0, %v1372
        %v1374 = vrot.slane %v1355, %v1373
        %v1375 = vlaneseq
        %v1376 = vshrl.u32 %v1375, 7
        %v1377 = vsub.s32 0, %v1376
        %v1378 = vrot.slane %v1356, %v1377
        %v1379 = vlaneseq
        %v1380 = vshrl.u32 %v1379, 7
        %v1381 = vsub.s32 0, %v1380
        %v1382 = vrot.slane %v1357, %v1381
        %v1383 = vlaneseq
        %v1384 = vshrl.u32 %v1383, 7
        %v1385 = vsub.s32 0, %v1384
        %v1386 = vrot.slane %v1358, %v1385
        %v1387 = vlaneseq
        %v1388 = vshrl.u32 %v1387, 7
        %v1389 = vsub.s32 0, %v1388
        %v1390 = vrot.slane %v1359, %v1389
        %v1391 = vlaneseq
        %v1392 = vshrl.u32 %v1391, 7
        %v1393 = vsub.s32 0, %v1392
        %v1394 = vrot.slane %v1360, %v1393
        %v1395 = vlaneseq
        %v1396 = vshrl.u32 %v1395, 7
        %v1397 = vsub.s32 0, %v1396
        %v1398 = vrot.slane %v1361, %v1397
        %v1399 = vlaneseq
        %v1400 = vshrl.u32 %v1399, 7
        %v1401 = vsub.s32 0, %v1400
        %v1402 = vrot.slane %v1362, %v1401
        %v1403 = vsel %vm396, %v1378, %v1374
        %v1404 = vsel %vm398, %v1382, %v1403
        %v1405 = vsel %vm400, %v1386, %v1404
        %v1406 = vsel %vm402, %v1390, %v1405
        %v1407 = vsel %vm404, %v1394, %v1406
        %v1408 = vsel %vm406, %v1398, %v1407
        %v1409 = vsel %vm408, %v1402, %v1408
        %1411 = vxpose.xlu0.b32.start [1/16] %v1409, 128
        %1412 = vxpose.xlu0.b32.cont [2/16] 0.0, 128
        %1413 = vxpose.xlu0.b32.cont [3/16] 0.0, 128
        %1414 = vxpose.xlu0.b32.cont [4/16] 0.0, 128
        %1415 = vxpose.xlu0.b32.cont [5/16] 0.0, 128
        %1416 = vxpose.xlu0.b32.cont [6/16] 0.0, 128
        %1417 = vxpose.xlu0.b32.cont [7/16] 0.0, 128
        %1418 = vxpose.xlu0.b32.cont [8/16] 0.0, 128
        %1419 = vxpose.xlu0.b32.cont [9/16] 0.0, 128
        %1420 = vxpose.xlu0.b32.cont [10/16] 0.0, 128
        %1421 = vxpose.xlu0.b32.cont [11/16] 0.0, 128
        %1422 = vxpose.xlu0.b32.cont [12/16] 0.0, 128
        %1423 = vxpose.xlu0.b32.cont [13/16] 0.0, 128
        %1424 = vxpose.xlu0.b32.cont [14/16] 0.0, 128
        %1425 = vxpose.xlu0.b32.cont [15/16] 0.0, 128
        %1426 = vxpose.xlu0.b32.end [16/16] 0.0, 128
        %v1427 = vpop.trf.xlu0
        %v1428 = vpop.trf.xlu0
        %v1429 = vpop.trf.xlu0
        %v1430 = vpop.trf.xlu0
        %v1431 = vpop.trf.xlu0
        %v1432 = vpop.trf.xlu0
        %v1433 = vpop.trf.xlu0
        %v1434 = vpop.trf.xlu0
        %v1435 = vpop.trf.xlu0
        %v1436 = vpop.trf.xlu0
        %v1437 = vpop.trf.xlu0
        %v1438 = vpop.trf.xlu0
        %v1439 = vpop.trf.xlu0
        %v1440 = vpop.trf.xlu0
        %v1441 = vpop.trf.xlu0
        %v1442 = vpop.trf.xlu0
        %v1445 = vcombine.high %v1427, %v1427
        %v1447 = vunpack.c.l.s4 1983009808
        %v1448 = vunpack.c.0.s8 %v1447
        %v1449 = vlaneseq
        %v1450 = vshrl.u32 %v1449, 7
        %v1451 = vsub.s32 %v1448, %v1450
        %v1452 = vrot.slane %v1427, %v1451
        %v1454 = vunpack.c.l.s4 1983009808
        %v1455 = vunpack.c.0.s8 %v1454
        %v1456 = vlaneseq
        %v1457 = vshrl.u32 %v1456, 7
        %v1458 = vsub.s32 %v1455, %v1457
        %v1459 = vrot.slane %v1445, %v1458
        %v1460 = vcombine.high %v1452, %v1452
        %v1461 = vcombine.high %v1459, %v1459
        %v1462 = vcombine.high %v1428, %v1428
        %v1464 = vunpack.c.l.s4 1983009808
        %v1465 = vunpack.c.0.s8 %v1464
        %v1466 = vlaneseq
        %v1467 = vshrl.u32 %v1466, 7
        %v1468 = vsub.s32 %v1465, %v1467
        %v1469 = vrot.slane %v1428, %v1468
        %v1471 = vunpack.c.l.s4 1983009808
        %v1472 = vunpack.c.0.s8 %v1471
        %v1473 = vlaneseq
        %v1474 = vshrl.u32 %v1473, 7
        %v1475 = vsub.s32 %v1472, %v1474
        %v1476 = vrot.slane %v1462, %v1475
        %v1477 = vcombine.high %v1469, %v1469
        %v1478 = vcombine.high %v1476, %v1476
        %v1487 = vrot.slane %v1452, 7
        %v1488 = vrot.slane %v1487, 2
        %v1489 = vrot.slane %v1460, 7
        %v1490 = vrot.slane %v1489, 2
        %v1491 = vrot.slane %v1459, 7
        %v1492 = vrot.slane %v1491, 2
        %v1493 = vrot.slane %v1461, 7
        %v1494 = vrot.slane %v1493, 2
        %v1495 = vrot.slane %v1469, 7
        %v1496 = vrot.slane %v1495, 2
        %v1497 = vrot.slane %v1477, 7
        %v1498 = vrot.slane %v1497, 2
        %v1499 = vrot.slane %v1476, 7
        %v1500 = vrot.slane %v1499, 2
        %v1501 = vrot.slane %v1478, 7
        %v1502 = vrot.slane %v1501, 2
        %v1511 = vadd.f32 %v1452, %v1488
        %v1512 = vadd.f32 %v1460, %v1490
        %v1513 = vadd.f32 %v1459, %v1492
        %v1514 = vadd.f32 %v1461, %v1494
        %v1515 = vadd.f32 %v1469, %v1496
        %v1516 = vadd.f32 %v1477, %v1498
        %v1517 = vadd.f32 %v1476, %v1500
        %v1518 = vadd.f32 %v1478, %v1502
        %v1519 = vmul.f32 %v1511, 0.25
        %v1520 = vmul.f32 %v1512, 0.25
        %v1521 = vmul.f32 %v1513, 0.25
        %v1522 = vmul.f32 %v1514, 0.25
        %v1523 = vmul.f32 %v1515, 0.25
        %v1524 = vmul.f32 %v1516, 0.25
        %v1525 = vmul.f32 %v1517, 0.25
        %v1526 = vmul.f32 %v1518, 0.25
        %s1527 = sld [smem:[#allocation7 + $0x5]]
        %v1528 = vstv %s1527
        %v1529 = vmul.f32 %v264, %v1528
        %v1530 = vmul.f32 %v265, %v1528
        %s1531 = sld [smem:[#allocation8 + $0x5]]
        %v1532 = vstv %s1531
        %v1533 = vadd.f32 %v1529, %v1532
        %v1534 = vadd.f32 %v1530, %v1532
        %v1535 = vmax.f32 %v1533, 0.0
        %v1536 = vmax.f32 %v1534, 0.0
        %v1539 = vcombine.high %v1535, %v1535
        %v1541 = vunpack.c.l.s4 1983009808
        %v1542 = vunpack.c.0.s8 %v1541
        %v1543 = vlaneseq
        %v1544 = vshrl.u32 %v1543, 7
        %v1545 = vsub.s32 %v1542, %v1544
        %v1546 = vrot.slane %v1535, %v1545
        %v1548 = vunpack.c.l.s4 1983009808
        %v1549 = vunpack.c.0.s8 %v1548
        %v1550 = vlaneseq
        %v1551 = vshrl.u32 %v1550, 7
        %v1552 = vsub.s32 %v1549, %v1551
        %v1553 = vrot.slane %v1539, %v1552
        %v1554 = vcombine.high %v1546, %v1546
        %v1555 = vcombine.high %v1553, %v1553
        %v1556 = vcombine.high %v1536, %v1536
        %v1558 = vunpack.c.l.s4 1983009808
        %v1559 = vunpack.c.0.s8 %v1558
        %v1560 = vlaneseq
        %v1561 = vshrl.u32 %v1560, 7
        %v1562 = vsub.s32 %v1559, %v1561
        %v1563 = vrot.slane %v1536, %v1562
        %v1565 = vunpack.c.l.s4 1983009808
        %v1566 = vunpack.c.0.s8 %v1565
        %v1567 = vlaneseq
        %v1568 = vshrl.u32 %v1567, 7
        %v1569 = vsub.s32 %v1566, %v1568
        %v1570 = vrot.slane %v1556, %v1569
        %v1571 = vcombine.high %v1563, %v1563
        %v1572 = vcombine.high %v1570, %v1570
        %v1581 = vrot.slane %v1546, 7
        %v1582 = vrot.slane %v1581, 2
        %v1583 = vrot.slane %v1554, 7
        %v1584 = vrot.slane %v1583, 2
        %v1585 = vrot.slane %v1553, 7
        %v1586 = vrot.slane %v1585, 2
        %v1587 = vrot.slane %v1555, 7
        %v1588 = vrot.slane %v1587, 2
        %v1589 = vrot.slane %v1563, 7
        %v1590 = vrot.slane %v1589, 2
        %v1591 = vrot.slane %v1571, 7
        %v1592 = vrot.slane %v1591, 2
        %v1593 = vrot.slane %v1570, 7
        %v1594 = vrot.slane %v1593, 2
        %v1595 = vrot.slane %v1572, 7
        %v1596 = vrot.slane %v1595, 2
        %v1605 = vadd.f32 %v1546, %v1582
        %v1606 = vadd.f32 %v1554, %v1584
        %v1607 = vadd.f32 %v1553, %v1586
        %v1608 = vadd.f32 %v1555, %v1588
        %v1609 = vadd.f32 %v1563, %v1590
        %v1610 = vadd.f32 %v1571, %v1592
        %v1611 = vadd.f32 %v1570, %v1594
        %v1612 = vadd.f32 %v1572, %v1596
        %v1621 = vlaneseq
        %v1622 = vshrl.u32 %v1621, 7
        %v1623 = vsub.s32 0, %v1622
        %v1624 = vrot.slane %v1605, %v1623
        %v1625 = vlaneseq
        %v1626 = vshrl.u32 %v1625, 7
        %v1627 = vsub.s32 0, %v1626
        %v1628 = vrot.slane %v1606, %v1627
        %v1629 = vlaneseq
        %v1630 = vshrl.u32 %v1629, 7
        %v1631 = vsub.s32 0, %v1630
        %v1632 = vrot.slane %v1607, %v1631
        %v1633 = vlaneseq
        %v1634 = vshrl.u32 %v1633, 7
        %v1635 = vsub.s32 0, %v1634
        %v1636 = vrot.slane %v1608, %v1635
        %v1637 = vlaneseq
        %v1638 = vshrl.u32 %v1637, 7
        %v1639 = vsub.s32 0, %v1638
        %v1640 = vrot.slane %v1609, %v1639
        %v1641 = vlaneseq
        %v1642 = vshrl.u32 %v1641, 7
        %v1643 = vsub.s32 0, %v1642
        %v1644 = vrot.slane %v1610, %v1643
        %v1645 = vlaneseq
        %v1646 = vshrl.u32 %v1645, 7
        %v1647 = vsub.s32 0, %v1646
        %v1648 = vrot.slane %v1611, %v1647
        %v1649 = vlaneseq
        %v1650 = vshrl.u32 %v1649, 7
        %v1651 = vsub.s32 0, %v1650
        %v1652 = vrot.slane %v1612, %v1651
        %v1653 = vsel %vm396, %v1628, %v1624
        %v1654 = vsel %vm398, %v1632, %v1653
        %v1655 = vsel %vm400, %v1636, %v1654
        %v1656 = vsel %vm402, %v1640, %v1655
        %v1657 = vsel %vm404, %v1644, %v1656
        %v1658 = vsel %vm406, %v1648, %v1657
        %v1659 = vsel %vm408, %v1652, %v1658
        %1661 = vxpose.xlu0.b32.start [1/16] %v1659, 128
        %1662 = vxpose.xlu0.b32.cont [2/16] 0.0, 128
        %1663 = vxpose.xlu0.b32.cont [3/16] 0.0, 128
        %1664 = vxpose.xlu0.b32.cont [4/16] 0.0, 128
        %1665 = vxpose.xlu0.b32.cont [5/16] 0.0, 128
        %1666 = vxpose.xlu0.b32.cont [6/16] 0.0, 128
        %1667 = vxpose.xlu0.b32.cont [7/16] 0.0, 128
        %1668 = vxpose.xlu0.b32.cont [8/16] 0.0, 128
        %1669 = vxpose.xlu0.b32.cont [9/16] 0.0, 128
        %1670 = vxpose.xlu0.b32.cont [10/16] 0.0, 128
        %1671 = vxpose.xlu0.b32.cont [11/16] 0.0, 128
        %1672 = vxpose.xlu0.b32.cont [12/16] 0.0, 128
        %1673 = vxpose.xlu0.b32.cont [13/16] 0.0, 128
        %1674 = vxpose.xlu0.b32.cont [14/16] 0.0, 128
        %1675 = vxpose.xlu0.b32.cont [15/16] 0.0, 128
        %1676 = vxpose.xlu0.b32.end [16/16] 0.0, 128
        %v1677 = vpop.trf.xlu0
        %v1678 = vpop.trf.xlu0
        %v1679 = vpop.trf.xlu0
        %v1680 = vpop.trf.xlu0
        %v1681 = vpop.trf.xlu0
        %v1682 = vpop.trf.xlu0
        %v1683 = vpop.trf.xlu0
        %v1684 = vpop.trf.xlu0
        %v1685 = vpop.trf.xlu0
        %v1686 = vpop.trf.xlu0
        %v1687 = vpop.trf.xlu0
        %v1688 = vpop.trf.xlu0
        %v1689 = vpop.trf.xlu0
        %v1690 = vpop.trf.xlu0
        %v1691 = vpop.trf.xlu0
        %v1692 = vpop.trf.xlu0
        %v1695 = vcombine.high %v1677, %v1677
        %v1697 = vunpack.c.l.s4 1983009808
        %v1698 = vunpack.c.0.s8 %v1697
        %v1699 = vlaneseq
        %v1700 = vshrl.u32 %v1699, 7
        %v1701 = vsub.s32 %v1698, %v1700
        %v1702 = vrot.slane %v1677, %v1701
        %v1704 = vunpack.c.l.s4 1983009808
        %v1705 = vunpack.c.0.s8 %v1704
        %v1706 = vlaneseq
        %v1707 = vshrl.u32 %v1706, 7
        %v1708 = vsub.s32 %v1705, %v1707
        %v1709 = vrot.slane %v1695, %v1708
        %v1710 = vcombine.high %v1702, %v1702
        %v1711 = vcombine.high %v1709, %v1709
        %v1712 = vcombine.high %v1678, %v1678
        %v1714 = vunpack.c.l.s4 1983009808
        %v1715 = vunpack.c.0.s8 %v1714
        %v1716 = vlaneseq
        %v1717 = vshrl.u32 %v1716, 7
        %v1718 = vsub.s32 %v1715, %v1717
        %v1719 = vrot.slane %v1678, %v1718
        %v1721 = vunpack.c.l.s4 1983009808
        %v1722 = vunpack.c.0.s8 %v1721
        %v1723 = vlaneseq
        %v1724 = vshrl.u32 %v1723, 7
        %v1725 = vsub.s32 %v1722, %v1724
        %v1726 = vrot.slane %v1712, %v1725
        %v1727 = vcombine.high %v1719, %v1719
        %v1728 = vcombine.high %v1726, %v1726
        %v1737 = vrot.slane %v1702, 7
        %v1738 = vrot.slane %v1737, 2
        %v1739 = vrot.slane %v1710, 7
        %v1740 = vrot.slane %v1739, 2
        %v1741 = vrot.slane %v1709, 7
        %v1742 = vrot.slane %v1741, 2
        %v1743 = vrot.slane %v1711, 7
        %v1744 = vrot.slane %v1743, 2
        %v1745 = vrot.slane %v1719, 7
        %v1746 = vrot.slane %v1745, 2
        %v1747 = vrot.slane %v1727, 7
        %v1748 = vrot.slane %v1747, 2
        %v1749 = vrot.slane %v1726, 7
        %v1750 = vrot.slane %v1749, 2
        %v1751 = vrot.slane %v1728, 7
        %v1752 = vrot.slane %v1751, 2
        %v1761 = vadd.f32 %v1702, %v1738
        %v1762 = vadd.f32 %v1710, %v1740
        %v1763 = vadd.f32 %v1709, %v1742
        %v1764 = vadd.f32 %v1711, %v1744
        %v1765 = vadd.f32 %v1719, %v1746
        %v1766 = vadd.f32 %v1727, %v1748
        %v1767 = vadd.f32 %v1726, %v1750
        %v1768 = vadd.f32 %v1728, %v1752
        %v1769 = vmul.f32 %v1761, 0.25
        %v1770 = vmul.f32 %v1762, 0.25
        %v1771 = vmul.f32 %v1763, 0.25
        %v1772 = vmul.f32 %v1764, 0.25
        %v1773 = vmul.f32 %v1765, 0.25
        %v1774 = vmul.f32 %v1766, 0.25
        %v1775 = vmul.f32 %v1767, 0.25
        %v1776 = vmul.f32 %v1768, 0.25
        %s1777 = sld [smem:[#allocation7 + $0x6]]
        %v1778 = vstv %s1777
        %v1779 = vmul.f32 %v266, %v1778
        %v1780 = vmul.f32 %v267, %v1778
        %s1781 = sld [smem:[#allocation8 + $0x6]]
        %v1782 = vstv %s1781
        %v1783 = vadd.f32 %v1779, %v1782
        %v1784 = vadd.f32 %v1780, %v1782
        %v1785 = vmax.f32 %v1783, 0.0
        %v1786 = vmax.f32 %v1784, 0.0
        %v1789 = vcombine.high %v1785, %v1785
        %v1791 = vunpack.c.l.s4 1983009808
        %v1792 = vunpack.c.0.s8 %v1791
        %v1793 = vlaneseq
        %v1794 = vshrl.u32 %v1793, 7
        %v1795 = vsub.s32 %v1792, %v1794
        %v1796 = vrot.slane %v1785, %v1795
        %v1798 = vunpack.c.l.s4 1983009808
        %v1799 = vunpack.c.0.s8 %v1798
        %v1800 = vlaneseq
        %v1801 = vshrl.u32 %v1800, 7
        %v1802 = vsub.s32 %v1799, %v1801
        %v1803 = vrot.slane %v1789, %v1802
        %v1804 = vcombine.high %v1796, %v1796
        %v1805 = vcombine.high %v1803, %v1803
        %v1806 = vcombine.high %v1786, %v1786
        %v1808 = vunpack.c.l.s4 1983009808
        %v1809 = vunpack.c.0.s8 %v1808
        %v1810 = vlaneseq
        %v1811 = vshrl.u32 %v1810, 7
        %v1812 = vsub.s32 %v1809, %v1811
        %v1813 = vrot.slane %v1786, %v1812
        %v1815 = vunpack.c.l.s4 1983009808
        %v1816 = vunpack.c.0.s8 %v1815
        %v1817 = vlaneseq
        %v1818 = vshrl.u32 %v1817, 7
        %v1819 = vsub.s32 %v1816, %v1818
        %v1820 = vrot.slane %v1806, %v1819
        %v1821 = vcombine.high %v1813, %v1813
        %v1822 = vcombine.high %v1820, %v1820
        %v1831 = vrot.slane %v1796, 7
        %v1832 = vrot.slane %v1831, 2
        %v1833 = vrot.slane %v1804, 7
        %v1834 = vrot.slane %v1833, 2
        %v1835 = vrot.slane %v1803, 7
        %v1836 = vrot.slane %v1835, 2
        %v1837 = vrot.slane %v1805, 7
        %v1838 = vrot.slane %v1837, 2
        %v1839 = vrot.slane %v1813, 7
        %v1840 = vrot.slane %v1839, 2
        %v1841 = vrot.slane %v1821, 7
        %v1842 = vrot.slane %v1841, 2
        %v1843 = vrot.slane %v1820, 7
        %v1844 = vrot.slane %v1843, 2
        %v1845 = vrot.slane %v1822, 7
        %v1846 = vrot.slane %v1845, 2
        %v1855 = vadd.f32 %v1796, %v1832
        %v1856 = vadd.f32 %v1804, %v1834
        %v1857 = vadd.f32 %v1803, %v1836
        %v1858 = vadd.f32 %v1805, %v1838
        %v1859 = vadd.f32 %v1813, %v1840
        %v1860 = vadd.f32 %v1821, %v1842
        %v1861 = vadd.f32 %v1820, %v1844
        %v1862 = vadd.f32 %v1822, %v1846
        %v1871 = vlaneseq
        %v1872 = vshrl.u32 %v1871, 7
        %v1873 = vsub.s32 0, %v1872
        %v1874 = vrot.slane %v1855, %v1873
        %v1875 = vlaneseq
        %v1876 = vshrl.u32 %v1875, 7
        %v1877 = vsub.s32 0, %v1876
        %v1878 = vrot.slane %v1856, %v1877
        %v1879 = vlaneseq
        %v1880 = vshrl.u32 %v1879, 7
        %v1881 = vsub.s32 0, %v1880
        %v1882 = vrot.slane %v1857, %v1881
        %v1883 = vlaneseq
        %v1884 = vshrl.u32 %v1883, 7
        %v1885 = vsub.s32 0, %v1884
        %v1886 = vrot.slane %v1858, %v1885
        %v1887 = vlaneseq
        %v1888 = vshrl.u32 %v1887, 7
        %v1889 = vsub.s32 0, %v1888
        %v1890 = vrot.slane %v1859, %v1889
        %v1891 = vlaneseq
        %v1892 = vshrl.u32 %v1891, 7
        %v1893 = vsub.s32 0, %v1892
        %v1894 = vrot.slane %v1860, %v1893
        %v1895 = vlaneseq
        %v1896 = vshrl.u32 %v1895, 7
        %v1897 = vsub.s32 0, %v1896
        %v1898 = vrot.slane %v1861, %v1897
        %v1899 = vlaneseq
        %v1900 = vshrl.u32 %v1899, 7
        %v1901 = vsub.s32 0, %v1900
        %v1902 = vrot.slane %v1862, %v1901
        %v1903 = vsel %vm396, %v1878, %v1874
        %v1904 = vsel %vm398, %v1882, %v1903
        %v1905 = vsel %vm400, %v1886, %v1904
        %v1906 = vsel %vm402, %v1890, %v1905
        %v1907 = vsel %vm404, %v1894, %v1906
        %v1908 = vsel %vm406, %v1898, %v1907
        %v1909 = vsel %vm408, %v1902, %v1908
        %1911 = vxpose.xlu0.b32.start [1/16] %v1909, 128
        %1912 = vxpose.xlu0.b32.cont [2/16] 0.0, 128
        %1913 = vxpose.xlu0.b32.cont [3/16] 0.0, 128
        %1914 = vxpose.xlu0.b32.cont [4/16] 0.0, 128
        %1915 = vxpose.xlu0.b32.cont [5/16] 0.0, 128
        %1916 = vxpose.xlu0.b32.cont [6/16] 0.0, 128
        %1917 = vxpose.xlu0.b32.cont [7/16] 0.0, 128
        %1918 = vxpose.xlu0.b32.cont [8/16] 0.0, 128
        %1919 = vxpose.xlu0.b32.cont [9/16] 0.0, 128
        %1920 = vxpose.xlu0.b32.cont [10/16] 0.0, 128
        %1921 = vxpose.xlu0.b32.cont [11/16] 0.0, 128
        %1922 = vxpose.xlu0.b32.cont [12/16] 0.0, 128
        %1923 = vxpose.xlu0.b32.cont [13/16] 0.0, 128
        %1924 = vxpose.xlu0.b32.cont [14/16] 0.0, 128
        %1925 = vxpose.xlu0.b32.cont [15/16] 0.0, 128
        %1926 = vxpose.xlu0.b32.end [16/16] 0.0, 128
        %v1927 = vpop.trf.xlu0
        %v1928 = vpop.trf.xlu0
        %v1929 = vpop.trf.xlu0
        %v1930 = vpop.trf.xlu0
        %v1931 = vpop.trf.xlu0
        %v1932 = vpop.trf.xlu0
        %v1933 = vpop.trf.xlu0
        %v1934 = vpop.trf.xlu0
        %v1935 = vpop.trf.xlu0
        %v1936 = vpop.trf.xlu0
        %v1937 = vpop.trf.xlu0
        %v1938 = vpop.trf.xlu0
        %v1939 = vpop.trf.xlu0
        %v1940 = vpop.trf.xlu0
        %v1941 = vpop.trf.xlu0
        %v1942 = vpop.trf.xlu0
        %v1945 = vcombine.high %v1927, %v1927
        %v1947 = vunpack.c.l.s4 1983009808
        %v1948 = vunpack.c.0.s8 %v1947
        %v1949 = vlaneseq
        %v1950 = vshrl.u32 %v1949, 7
        %v1951 = vsub.s32 %v1948, %v1950
        %v1952 = vrot.slane %v1927, %v1951
        %v1954 = vunpack.c.l.s4 1983009808
        %v1955 = vunpack.c.0.s8 %v1954
        %v1956 = vlaneseq
        %v1957 = vshrl.u32 %v1956, 7
        %v1958 = vsub.s32 %v1955, %v1957
        %v1959 = vrot.slane %v1945, %v1958
        %v1960 = vcombine.high %v1952, %v1952
        %v1961 = vcombine.high %v1959, %v1959
        %v1962 = vcombine.high %v1928, %v1928
        %v1964 = vunpack.c.l.s4 1983009808
        %v1965 = vunpack.c.0.s8 %v1964
        %v1966 = vlaneseq
        %v1967 = vshrl.u32 %v1966, 7
        %v1968 = vsub.s32 %v1965, %v1967
        %v1969 = vrot.slane %v1928, %v1968
        %v1971 = vunpack.c.l.s4 1983009808
        %v1972 = vunpack.c.0.s8 %v1971
        %v1973 = vlaneseq
        %v1974 = vshrl.u32 %v1973, 7
        %v1975 = vsub.s32 %v1972, %v1974
        %v1976 = vrot.slane %v1962, %v1975
        %v1977 = vcombine.high %v1969, %v1969
        %v1978 = vcombine.high %v1976, %v1976
        %v1987 = vrot.slane %v1952, 7
        %v1988 = vrot.slane %v1987, 2
        %v1989 = vrot.slane %v1960, 7
        %v1990 = vrot.slane %v1989, 2
        %v1991 = vrot.slane %v1959, 7
        %v1992 = vrot.slane %v1991, 2
        %v1993 = vrot.slane %v1961, 7
        %v1994 = vrot.slane %v1993, 2
        %v1995 = vrot.slane %v1969, 7
        %v1996 = vrot.slane %v1995, 2
        %v1997 = vrot.slane %v1977, 7
        %v1998 = vrot.slane %v1997, 2
        %v1999 = vrot.slane %v1976, 7
        %v2000 = vrot.slane %v1999, 2
        %v2001 = vrot.slane %v1978, 7
        %v2002 = vrot.slane %v2001, 2
        %v2011 = vadd.f32 %v1952, %v1988
        %v2012 = vadd.f32 %v1960, %v1990
        %v2013 = vadd.f32 %v1959, %v1992
        %v2014 = vadd.f32 %v1961, %v1994
        %v2015 = vadd.f32 %v1969, %v1996
        %v2016 = vadd.f32 %v1977, %v1998
        %v2017 = vadd.f32 %v1976, %v2000
        %v2018 = vadd.f32 %v1978, %v2002
        %v2019 = vmul.f32 %v2011, 0.25
        %v2020 = vmul.f32 %v2012, 0.25
        %v2021 = vmul.f32 %v2013, 0.25
        %v2022 = vmul.f32 %v2014, 0.25
        %v2023 = vmul.f32 %v2015, 0.25
        %v2024 = vmul.f32 %v2016, 0.25
        %v2025 = vmul.f32 %v2017, 0.25
        %v2026 = vmul.f32 %v2018, 0.25
        %s2027 = sld [smem:[#allocation7 + $0x7]]
        %v2028 = vstv %s2027
        %v2029 = vmul.f32 %v268, %v2028
        %v2030 = vmul.f32 %v269, %v2028
        %s2031 = sld [smem:[#allocation8 + $0x7]]
        %v2032 = vstv %s2031
        %v2033 = vadd.f32 %v2029, %v2032
        %v2034 = vadd.f32 %v2030, %v2032
        %v2035 = vmax.f32 %v2033, 0.0
        %v2036 = vmax.f32 %v2034, 0.0
        %v2039 = vcombine.high %v2035, %v2035
        %v2041 = vunpack.c.l.s4 1983009808
        %v2042 = vunpack.c.0.s8 %v2041
        %v2043 = vlaneseq
        %v2044 = vshrl.u32 %v2043, 7
        %v2045 = vsub.s32 %v2042, %v2044
        %v2046 = vrot.slane %v2035, %v2045
        %v2048 = vunpack.c.l.s4 1983009808
        %v2049 = vunpack.c.0.s8 %v2048
        %v2050 = vlaneseq
        %v2051 = vshrl.u32 %v2050, 7
        %v2052 = vsub.s32 %v2049, %v2051
        %v2053 = vrot.slane %v2039, %v2052
        %v2054 = vcombine.high %v2046, %v2046
        %v2055 = vcombine.high %v2053, %v2053
        %v2056 = vcombine.high %v2036, %v2036
        %v2058 = vunpack.c.l.s4 1983009808
        %v2059 = vunpack.c.0.s8 %v2058
        %v2060 = vlaneseq
        %v2061 = vshrl.u32 %v2060, 7
        %v2062 = vsub.s32 %v2059, %v2061
        %v2063 = vrot.slane %v2036, %v2062
        %v2065 = vunpack.c.l.s4 1983009808
        %v2066 = vunpack.c.0.s8 %v2065
        %v2067 = vlaneseq
        %v2068 = vshrl.u32 %v2067, 7
        %v2069 = vsub.s32 %v2066, %v2068
        %v2070 = vrot.slane %v2056, %v2069
        %v2071 = vcombine.high %v2063, %v2063
        %v2072 = vcombine.high %v2070, %v2070
        %v2081 = vrot.slane %v2046, 7
        %v2082 = vrot.slane %v2081, 2
        %v2083 = vrot.slane %v2054, 7
        %v2084 = vrot.slane %v2083, 2
        %v2085 = vrot.slane %v2053, 7
        %v2086 = vrot.slane %v2085, 2
        %v2087 = vrot.slane %v2055, 7
        %v2088 = vrot.slane %v2087, 2
        %v2089 = vrot.slane %v2063, 7
        %v2090 = vrot.slane %v2089, 2
        %v2091 = vrot.slane %v2071, 7
        %v2092 = vrot.slane %v2091, 2
        %v2093 = vrot.slane %v2070, 7
        %v2094 = vrot.slane %v2093, 2
        %v2095 = vrot.slane %v2072, 7
        %v2096 = vrot.slane %v2095, 2
        %v2105 = vadd.f32 %v2046, %v2082
        %v2106 = vadd.f32 %v2054, %v2084
        %v2107 = vadd.f32 %v2053, %v2086
        %v2108 = vadd.f32 %v2055, %v2088
        %v2109 = vadd.f32 %v2063, %v2090
        %v2110 = vadd.f32 %v2071, %v2092
        %v2111 = vadd.f32 %v2070, %v2094
        %v2112 = vadd.f32 %v2072, %v2096
        %v2121 = vlaneseq
        %v2122 = vshrl.u32 %v2121, 7
        %v2123 = vsub.s32 0, %v2122
        %v2124 = vrot.slane %v2105, %v2123
        %v2125 = vlaneseq
        %v2126 = vshrl.u32 %v2125, 7
        %v2127 = vsub.s32 0, %v2126
        %v2128 = vrot.slane %v2106, %v2127
        %v2129 = vlaneseq
        %v2130 = vshrl.u32 %v2129, 7
        %v2131 = vsub.s32 0, %v2130
        %v2132 = vrot.slane %v2107, %v2131
        %v2133 = vlaneseq
        %v2134 = vshrl.u32 %v2133, 7
        %v2135 = vsub.s32 0, %v2134
        %v2136 = vrot.slane %v2108, %v2135
        %v2137 = vlaneseq
        %v2138 = vshrl.u32 %v2137, 7
        %v2139 = vsub.s32 0, %v2138
        %v2140 = vrot.slane %v2109, %v2139
        %v2141 = vlaneseq
        %v2142 = vshrl.u32 %v2141, 7
        %v2143 = vsub.s32 0, %v2142
        %v2144 = vrot.slane %v2110, %v2143
        %v2145 = vlaneseq
        %v2146 = vshrl.u32 %v2145, 7
        %v2147 = vsub.s32 0, %v2146
        %v2148 = vrot.slane %v2111, %v2147
        %v2149 = vlaneseq
        %v2150 = vshrl.u32 %v2149, 7
        %v2151 = vsub.s32 0, %v2150
        %v2152 = vrot.slane %v2112, %v2151
        %v2153 = vsel %vm396, %v2128, %v2124
        %v2154 = vsel %vm398, %v2132, %v2153
        %v2155 = vsel %vm400, %v2136, %v2154
        %v2156 = vsel %vm402, %v2140, %v2155
        %v2157 = vsel %vm404, %v2144, %v2156
        %v2158 = vsel %vm406, %v2148, %v2157
        %v2159 = vsel %vm408, %v2152, %v2158
        %2161 = vxpose.xlu0.b32.start [1/16] %v2159, 128
        %2162 = vxpose.xlu0.b32.cont [2/16] 0.0, 128
        %2163 = vxpose.xlu0.b32.cont [3/16] 0.0, 128
        %2164 = vxpose.xlu0.b32.cont [4/16] 0.0, 128
        %2165 = vxpose.xlu0.b32.cont [5/16] 0.0, 128
        %2166 = vxpose.xlu0.b32.cont [6/16] 0.0, 128
        %2167 = vxpose.xlu0.b32.cont [7/16] 0.0, 128
        %2168 = vxpose.xlu0.b32.cont [8/16] 0.0, 128
        %2169 = vxpose.xlu0.b32.cont [9/16] 0.0, 128
        %2170 = vxpose.xlu0.b32.cont [10/16] 0.0, 128
        %2171 = vxpose.xlu0.b32.cont [11/16] 0.0, 128
        %2172 = vxpose.xlu0.b32.cont [12/16] 0.0, 128
        %2173 = vxpose.xlu0.b32.cont [13/16] 0.0, 128
        %2174 = vxpose.xlu0.b32.cont [14/16] 0.0, 128
        %2175 = vxpose.xlu0.b32.cont [15/16] 0.0, 128
        %2176 = vxpose.xlu0.b32.end [16/16] 0.0, 128
        %v2177 = vpop.trf.xlu0
        %v2178 = vpop.trf.xlu0
        %v2179 = vpop.trf.xlu0
        %v2180 = vpop.trf.xlu0
        %v2181 = vpop.trf.xlu0
        %v2182 = vpop.trf.xlu0
        %v2183 = vpop.trf.xlu0
        %v2184 = vpop.trf.xlu0
        %v2185 = vpop.trf.xlu0
        %v2186 = vpop.trf.xlu0
        %v2187 = vpop.trf.xlu0
        %v2188 = vpop.trf.xlu0
        %v2189 = vpop.trf.xlu0
        %v2190 = vpop.trf.xlu0
        %v2191 = vpop.trf.xlu0
        %v2192 = vpop.trf.xlu0
        %v2195 = vcombine.high %v2177, %v2177
        %v2197 = vunpack.c.l.s4 1983009808
        %v2198 = vunpack.c.0.s8 %v2197
        %v2199 = vlaneseq
        %v2200 = vshrl.u32 %v2199, 7
        %v2201 = vsub.s32 %v2198, %v2200
        %v2202 = vrot.slane %v2177, %v2201
        %v2204 = vunpack.c.l.s4 1983009808
        %v2205 = vunpack.c.0.s8 %v2204
        %v2206 = vlaneseq
        %v2207 = vshrl.u32 %v2206, 7
        %v2208 = vsub.s32 %v2205, %v2207
        %v2209 = vrot.slane %v2195, %v2208
        %v2210 = vcombine.high %v2202, %v2202
        %v2211 = vcombine.high %v2209, %v2209
        %v2212 = vcombine.high %v2178, %v2178
        %v2214 = vunpack.c.l.s4 1983009808
        %v2215 = vunpack.c.0.s8 %v2214
        %v2216 = vlaneseq
        %v2217 = vshrl.u32 %v2216, 7
        %v2218 = vsub.s32 %v2215, %v2217
        %v2219 = vrot.slane %v2178, %v2218
        %v2221 = vunpack.c.l.s4 1983009808
        %v2222 = vunpack.c.0.s8 %v2221
        %v2223 = vlaneseq
        %v2224 = vshrl.u32 %v2223, 7
        %v2225 = vsub.s32 %v2222, %v2224
        %v2226 = vrot.slane %v2212, %v2225
        %v2227 = vcombine.high %v2219, %v2219
        %v2228 = vcombine.high %v2226, %v2226
        %v2237 = vrot.slane %v2202, 7
        %v2238 = vrot.slane %v2237, 2
        %v2239 = vrot.slane %v2210, 7
        %v2240 = vrot.slane %v2239, 2
        %v2241 = vrot.slane %v2209, 7
        %v2242 = vrot.slane %v2241, 2
        %v2243 = vrot.slane %v2211, 7
        %v2244 = vrot.slane %v2243, 2
        %v2245 = vrot.slane %v2219, 7
        %v2246 = vrot.slane %v2245, 2
        %v2247 = vrot.slane %v2227, 7
        %v2248 = vrot.slane %v2247, 2
        %v2249 = vrot.slane %v2226, 7
        %v2250 = vrot.slane %v2249, 2
        %v2251 = vrot.slane %v2228, 7
        %v2252 = vrot.slane %v2251, 2
        %v2261 = vadd.f32 %v2202, %v2238
        %v2262 = vadd.f32 %v2210, %v2240
        %v2263 = vadd.f32 %v2209, %v2242
        %v2264 = vadd.f32 %v2211, %v2244
        %v2265 = vadd.f32 %v2219, %v2246
        %v2266 = vadd.f32 %v2227, %v2248
        %v2267 = vadd.f32 %v2226, %v2250
        %v2268 = vadd.f32 %v2228, %v2252
        %v2269 = vmul.f32 %v2261, 0.25
        %v2270 = vmul.f32 %v2262, 0.25
        %v2271 = vmul.f32 %v2263, 0.25
        %v2272 = vmul.f32 %v2264, 0.25
        %v2273 = vmul.f32 %v2265, 0.25
        %v2274 = vmul.f32 %v2266, 0.25
        %v2275 = vmul.f32 %v2267, 0.25
        %v2276 = vmul.f32 %v2268, 0.25
        %s2277 = sld [smem:[#allocation9]]
        %v2278 = vstv %s2277
        %v2279 = vmul.f32 %v519, %v2278
        %v2280 = vmul.f32 %v520, %v2278
        %v2281 = vmul.f32 %v521, %v2278
        %v2282 = vmul.f32 %v522, %v2278
        %v2283 = vmul.f32 %v523, %v2278
        %v2284 = vmul.f32 %v524, %v2278
        %v2285 = vmul.f32 %v525, %v2278
        %v2286 = vmul.f32 %v526, %v2278
        %s2287 = sld [smem:[#allocation9 + $0x1]]
        %v2288 = vstv %s2287
        %v2289 = vmul.f32 %v769, %v2288
        %v2290 = vmul.f32 %v770, %v2288
        %v2291 = vmul.f32 %v771, %v2288
        %v2292 = vmul.f32 %v772, %v2288
        %v2293 = vmul.f32 %v773, %v2288
        %v2294 = vmul.f32 %v774, %v2288
        %v2295 = vmul.f32 %v775, %v2288
        %v2296 = vmul.f32 %v776, %v2288
        %v2297 = vadd.f32 %v2279, %v2289
        %v2298 = vadd.f32 %v2280, %v2290
        %v2299 = vadd.f32 %v2281, %v2291
        %v2300 = vadd.f32 %v2282, %v2292
        %v2301 = vadd.f32 %v2283, %v2293
        %v2302 = vadd.f32 %v2284, %v2294
        %v2303 = vadd.f32 %v2285, %v2295
        %v2304 = vadd.f32 %v2286, %v2296
        %s2305 = sld [smem:[#allocation9 + $0x2]]
        %v2306 = vstv %s2305
        %v2307 = vmul.f32 %v1019, %v2306
        %v2308 = vmul.f32 %v1020, %v2306
        %v2309 = vmul.f32 %v1021, %v2306
        %v2310 = vmul.f32 %v1022, %v2306
        %v2311 = vmul.f32 %v1023, %v2306
        %v2312 = vmul.f32 %v1024, %v2306
        %v2313 = vmul.f32 %v1025, %v2306
        %v2314 = vmul.f32 %v1026, %v2306
        %v2315 = vadd.f32 %v2297, %v2307
        %v2316 = vadd.f32 %v2298, %v2308
        %v2317 = vadd.f32 %v2299, %v2309
        %v2318 = vadd.f32 %v2300, %v2310
        %v2319 = vadd.f32 %v2301, %v2311
        %v2320 = vadd.f32 %v2302, %v2312
        %v2321 = vadd.f32 %v2303, %v2313
        %v2322 = vadd.f32 %v2304, %v2314
        %s2323 = sld [smem:[#allocation9 + $0x3]]
        %v2324 = vstv %s2323
        %v2325 = vmul.f32 %v1269, %v2324
        %v2326 = vmul.f32 %v1270, %v2324
        %v2327 = vmul.f32 %v1271, %v2324
        %v2328 = vmul.f32 %v1272, %v2324
        %v2329 = vmul.f32 %v1273, %v2324
        %v2330 = vmul.f32 %v1274, %v2324
        %v2331 = vmul.f32 %v1275, %v2324
        %v2332 = vmul.f32 %v1276, %v2324
        %v2333 = vadd.f32 %v2315, %v2325
        %v2334 = vadd.f32 %v2316, %v2326
        %v2335 = vadd.f32 %v2317, %v2327
        %v2336 = vadd.f32 %v2318, %v2328
        %v2337 = vadd.f32 %v2319, %v2329
        %v2338 = vadd.f32 %v2320, %v2330
        %v2339 = vadd.f32 %v2321, %v2331
        %v2340 = vadd.f32 %v2322, %v2332
        %v2349 = vlaneseq
        %v2350 = vshrl.u32 %v2349, 7
        %v2351 = vsub.s32 0, %v2350
        %v2352 = vrot.slane %v2333, %v2351
        %v2353 = vlaneseq
        %v2354 = vshrl.u32 %v2353, 7
        %v2355 = vsub.s32 0, %v2354
        %v2356 = vrot.slane %v2334, %v2355
        %v2357 = vlaneseq
        %v2358 = vshrl.u32 %v2357, 7
        %v2359 = vsub.s32 0, %v2358
        %v2360 = vrot.slane %v2335, %v2359
        %v2361 = vlaneseq
        %v2362 = vshrl.u32 %v2361, 7
        %v2363 = vsub.s32 0, %v2362
        %v2364 = vrot.slane %v2336, %v2363
        %v2365 = vlaneseq
        %v2366 = vshrl.u32 %v2365, 7
        %v2367 = vsub.s32 0, %v2366
        %v2368 = vrot.slane %v2337, %v2367
        %v2369 = vlaneseq
        %v2370 = vshrl.u32 %v2369, 7
        %v2371 = vsub.s32 0, %v2370
        %v2372 = vrot.slane %v2338, %v2371
        %v2373 = vlaneseq
        %v2374 = vshrl.u32 %v2373, 7
        %v2375 = vsub.s32 0, %v2374
        %v2376 = vrot.slane %v2339, %v2375
        %v2377 = vlaneseq
        %v2378 = vshrl.u32 %v2377, 7
        %v2379 = vsub.s32 0, %v2378
        %v2380 = vrot.slane %v2340, %v2379
        %v2381 = vsel %vm396, %v2356, %v2352
        %v2382 = vsel %vm398, %v2360, %v2381
        %v2383 = vsel %vm400, %v2364, %v2382
        %v2384 = vsel %vm402, %v2368, %v2383
        %v2385 = vsel %vm404, %v2372, %v2384
        %v2386 = vsel %vm406, %v2376, %v2385
        %v2387 = vsel %vm408, %v2380, %v2386
        %2389 = vxpose.xlu0.b32.start [1/16] %v2387, 128
        %2390 = vxpose.xlu0.b32.cont [2/16] 0.0, 128
        %2391 = vxpose.xlu0.b32.cont [3/16] 0.0, 128
        %2392 = vxpose.xlu0.b32.cont [4/16] 0.0, 128
        %2393 = vxpose.xlu0.b32.cont [5/16] 0.0, 128
        %2394 = vxpose.xlu0.b32.cont [6/16] 0.0, 128
        %2395 = vxpose.xlu0.b32.cont [7/16] 0.0, 128
        %2396 = vxpose.xlu0.b32.cont [8/16] 0.0, 128
        %2397 = vxpose.xlu0.b32.cont [9/16] 0.0, 128
        %2398 = vxpose.xlu0.b32.cont [10/16] 0.0, 128
        %2399 = vxpose.xlu0.b32.cont [11/16] 0.0, 128
        %2400 = vxpose.xlu0.b32.cont [12/16] 0.0, 128
        %2401 = vxpose.xlu0.b32.cont [13/16] 0.0, 128
        %2402 = vxpose.xlu0.b32.cont [14/16] 0.0, 128
        %2403 = vxpose.xlu0.b32.cont [15/16] 0.0, 128
        %2404 = vxpose.xlu0.b32.end [16/16] 0.0, 128
        %v2405 = vpop.trf.xlu0
        %v2406 = vpop.trf.xlu0
        %v2407 = vpop.trf.xlu0
        %v2408 = vpop.trf.xlu0
        %v2409 = vpop.trf.xlu0
        %v2410 = vpop.trf.xlu0
        %v2411 = vpop.trf.xlu0
        %v2412 = vpop.trf.xlu0
        %v2413 = vpop.trf.xlu0
        %v2414 = vpop.trf.xlu0
        %v2415 = vpop.trf.xlu0
        %v2416 = vpop.trf.xlu0
        %v2417 = vpop.trf.xlu0
        %v2418 = vpop.trf.xlu0
        %v2419 = vpop.trf.xlu0
        %v2420 = vpop.trf.xlu0
        %vm2421 = vcmask 64512
        %2422 = vst.msk [vmem:[%s253] sm:$0xff] %vm2421, %v2405
        %s2423 = sld [smem:[#allocation9 + $0x80]]
        %v2424 = vstv %s2423
        %v2425 = vmul.f32 %v519, %v2424
        %v2426 = vmul.f32 %v520, %v2424
        %v2427 = vmul.f32 %v521, %v2424
        %v2428 = vmul.f32 %v522, %v2424
        %v2429 = vmul.f32 %v523, %v2424
        %v2430 = vmul.f32 %v524, %v2424
        %v2431 = vmul.f32 %v525, %v2424
        %v2432 = vmul.f32 %v526, %v2424
        %s2433 = sld [smem:[#allocation9 + $0x81]]
        %v2434 = vstv %s2433
        %v2435 = vmul.f32 %v769, %v2434
        %v2436 = vmul.f32 %v770, %v2434
        %v2437 = vmul.f32 %v771, %v2434
        %v2438 = vmul.f32 %v772, %v2434
        %v2439 = vmul.f32 %v773, %v2434
        %v2440 = vmul.f32 %v774, %v2434
        %v2441 = vmul.f32 %v775, %v2434
        %v2442 = vmul.f32 %v776, %v2434
        %v2443 = vadd.f32 %v2425, %v2435
        %v2444 = vadd.f32 %v2426, %v2436
        %v2445 = vadd.f32 %v2427, %v2437
        %v2446 = vadd.f32 %v2428, %v2438
        %v2447 = vadd.f32 %v2429, %v2439
        %v2448 = vadd.f32 %v2430, %v2440
        %v2449 = vadd.f32 %v2431, %v2441
        %v2450 = vadd.f32 %v2432, %v2442
        %s2451 = sld [smem:[#allocation9 + $0x82]]
        %v2452 = vstv %s2451
        %v2453 = vmul.f32 %v1019, %v2452
        %v2454 = vmul.f32 %v1020, %v2452
        %v2455 = vmul.f32 %v1021, %v2452
        %v2456 = vmul.f32 %v1022, %v2452
        %v2457 = vmul.f32 %v1023, %v2452
        %v2458 = vmul.f32 %v1024, %v2452
        %v2459 = vmul.f32 %v1025, %v2452
        %v2460 = vmul.f32 %v1026, %v2452
        %v2461 = vadd.f32 %v2443, %v2453
        %v2462 = vadd.f32 %v2444, %v2454
        %v2463 = vadd.f32 %v2445, %v2455
        %v2464 = vadd.f32 %v2446, %v2456
        %v2465 = vadd.f32 %v2447, %v2457
        %v2466 = vadd.f32 %v2448, %v2458
        %v2467 = vadd.f32 %v2449, %v2459
        %v2468 = vadd.f32 %v2450, %v2460
        %s2469 = sld [smem:[#allocation9 + $0x83]]
        %v2470 = vstv %s2469
        %v2471 = vmul.f32 %v1269, %v2470
        %v2472 = vmul.f32 %v1270, %v2470
        %v2473 = vmul.f32 %v1271, %v2470
        %v2474 = vmul.f32 %v1272, %v2470
        %v2475 = vmul.f32 %v1273, %v2470
        %v2476 = vmul.f32 %v1274, %v2470
        %v2477 = vmul.f32 %v1275, %v2470
        %v2478 = vmul.f32 %v1276, %v2470
        %v2479 = vadd.f32 %v2461, %v2471
        %v2480 = vadd.f32 %v2462, %v2472
        %v2481 = vadd.f32 %v2463, %v2473
        %v2482 = vadd.f32 %v2464, %v2474
        %v2483 = vadd.f32 %v2465, %v2475
        %v2484 = vadd.f32 %v2466, %v2476
        %v2485 = vadd.f32 %v2467, %v2477
        %v2486 = vadd.f32 %v2468, %v2478
        %v2495 = vlaneseq
        %v2496 = vshrl.u32 %v2495, 7
        %v2497 = vsub.s32 0, %v2496
        %v2498 = vrot.slane %v2479, %v2497
        %v2499 = vlaneseq
        %v2500 = vshrl.u32 %v2499, 7
        %v2501 = vsub.s32 0, %v2500
        %v2502 = vrot.slane %v2480, %v2501
        %v2503 = vlaneseq
        %v2504 = vshrl.u32 %v2503, 7
        %v2505 = vsub.s32 0, %v2504
        %v2506 = vrot.slane %v2481, %v2505
        %v2507 = vlaneseq
        %v2508 = vshrl.u32 %v2507, 7
        %v2509 = vsub.s32 0, %v2508
        %v2510 = vrot.slane %v2482, %v2509
        %v2511 = vlaneseq
        %v2512 = vshrl.u32 %v2511, 7
        %v2513 = vsub.s32 0, %v2512
        %v2514 = vrot.slane %v2483, %v2513
        %v2515 = vlaneseq
        %v2516 = vshrl.u32 %v2515, 7
        %v2517 = vsub.s32 0, %v2516
        %v2518 = vrot.slane %v2484, %v2517
        %v2519 = vlaneseq
        %v2520 = vshrl.u32 %v2519, 7
        %v2521 = vsub.s32 0, %v2520
        %v2522 = vrot.slane %v2485, %v2521
        %v2523 = vlaneseq
        %v2524 = vshrl.u32 %v2523, 7
        %v2525 = vsub.s32 0, %v2524
        %v2526 = vrot.slane %v2486, %v2525
        %v2527 = vsel %vm396, %v2502, %v2498
        %v2528 = vsel %vm398, %v2506, %v2527
        %v2529 = vsel %vm400, %v2510, %v2528
        %v2530 = vsel %vm402, %v2514, %v2529
        %v2531 = vsel %vm404, %v2518, %v2530
        %v2532 = vsel %vm406, %v2522, %v2531
        %v2533 = vsel %vm408, %v2526, %v2532
        %2535 = vxpose.xlu0.b32.start [1/16] %v2533, 128
        %2536 = vxpose.xlu0.b32.cont [2/16] 0.0, 128
        %2537 = vxpose.xlu0.b32.cont [3/16] 0.0, 128
        %2538 = vxpose.xlu0.b32.cont [4/16] 0.0, 128
        %2539 = vxpose.xlu0.b32.cont [5/16] 0.0, 128
        %2540 = vxpose.xlu0.b32.cont [6/16] 0.0, 128
        %2541 = vxpose.xlu0.b32.cont [7/16] 0.0, 128
        %2542 = vxpose.xlu0.b32.cont [8/16] 0.0, 128
        %2543 = vxpose.xlu0.b32.cont [9/16] 0.0, 128
        %2544 = vxpose.xlu0.b32.cont [10/16] 0.0, 128
        %2545 = vxpose.xlu0.b32.cont [11/16] 0.0, 128
        %2546 = vxpose.xlu0.b32.cont [12/16] 0.0, 128
        %2547 = vxpose.xlu0.b32.cont [13/16] 0.0, 128
        %2548 = vxpose.xlu0.b32.cont [14/16] 0.0, 128
        %2549 = vxpose.xlu0.b32.cont [15/16] 0.0, 128
        %2550 = vxpose.xlu0.b32.end [16/16] 0.0, 128
        %v2551 = vpop.trf.xlu0
        %v2552 = vpop.trf.xlu0
        %v2553 = vpop.trf.xlu0
        %v2554 = vpop.trf.xlu0
        %v2555 = vpop.trf.xlu0
        %v2556 = vpop.trf.xlu0
        %v2557 = vpop.trf.xlu0
        %v2558 = vpop.trf.xlu0
        %v2559 = vpop.trf.xlu0
        %v2560 = vpop.trf.xlu0
        %v2561 = vpop.trf.xlu0
        %v2562 = vpop.trf.xlu0
        %v2563 = vpop.trf.xlu0
        %v2564 = vpop.trf.xlu0
        %v2565 = vpop.trf.xlu0
        %v2566 = vpop.trf.xlu0
        %s2567 = scalar_lea.vmem %s253, 8 [#allocation11]
        %2568 = vst.msk [vmem:[%s2567] sm:$0xff] %vm2421, %v2551
        %s2569 = sld [smem:[#allocation9 + $0x100]]
        %v2570 = vstv %s2569
        %v2571 = vmul.f32 %v1519, %v2570
        %v2572 = vmul.f32 %v1520, %v2570
        %v2573 = vmul.f32 %v1521, %v2570
        %v2574 = vmul.f32 %v1522, %v2570
        %v2575 = vmul.f32 %v1523, %v2570
        %v2576 = vmul.f32 %v1524, %v2570
        %v2577 = vmul.f32 %v1525, %v2570
        %v2578 = vmul.f32 %v1526, %v2570
        %s2579 = sld [smem:[#allocation9 + $0x101]]
        %v2580 = vstv %s2579
        %v2581 = vmul.f32 %v1769, %v2580
        %v2582 = vmul.f32 %v1770, %v2580
        %v2583 = vmul.f32 %v1771, %v2580
        %v2584 = vmul.f32 %v1772, %v2580
        %v2585 = vmul.f32 %v1773, %v2580
        %v2586 = vmul.f32 %v1774, %v2580
        %v2587 = vmul.f32 %v1775, %v2580
        %v2588 = vmul.f32 %v1776, %v2580
        %v2589 = vadd.f32 %v2571, %v2581
        %v2590 = vadd.f32 %v2572, %v2582
        %v2591 = vadd.f32 %v2573, %v2583
        %v2592 = vadd.f32 %v2574, %v2584
        %v2593 = vadd.f32 %v2575, %v2585
        %v2594 = vadd.f32 %v2576, %v2586
        %v2595 = vadd.f32 %v2577, %v2587
        %v2596 = vadd.f32 %v2578, %v2588
        %s2597 = sld [smem:[#allocation9 + $0x102]]
        %v2598 = vstv %s2597
        %v2599 = vmul.f32 %v2019, %v2598
        %v2600 = vmul.f32 %v2020, %v2598
        %v2601 = vmul.f32 %v2021, %v2598
        %v2602 = vmul.f32 %v2022, %v2598
        %v2603 = vmul.f32 %v2023, %v2598
        %v2604 = vmul.f32 %v2024, %v2598
        %v2605 = vmul.f32 %v2025, %v2598
        %v2606 = vmul.f32 %v2026, %v2598
        %v2607 = vadd.f32 %v2589, %v2599
        %v2608 = vadd.f32 %v2590, %v2600
        %v2609 = vadd.f32 %v2591, %v2601
        %v2610 = vadd.f32 %v2592, %v2602
        %v2611 = vadd.f32 %v2593, %v2603
        %v2612 = vadd.f32 %v2594, %v2604
        %v2613 = vadd.f32 %v2595, %v2605
        %v2614 = vadd.f32 %v2596, %v2606
        %s2615 = sld [smem:[#allocation9 + $0x103]]
        %v2616 = vstv %s2615
        %v2617 = vmul.f32 %v2269, %v2616
        %v2618 = vmul.f32 %v2270, %v2616
        %v2619 = vmul.f32 %v2271, %v2616
        %v2620 = vmul.f32 %v2272, %v2616
        %v2621 = vmul.f32 %v2273, %v2616
        %v2622 = vmul.f32 %v2274, %v2616
        %v2623 = vmul.f32 %v2275, %v2616
        %v2624 = vmul.f32 %v2276, %v2616
        %v2625 = vadd.f32 %v2607, %v2617
        %v2626 = vadd.f32 %v2608, %v2618
        %v2627 = vadd.f32 %v2609, %v2619
        %v2628 = vadd.f32 %v2610, %v2620
        %v2629 = vadd.f32 %v2611, %v2621
        %v2630 = vadd.f32 %v2612, %v2622
        %v2631 = vadd.f32 %v2613, %v2623
        %v2632 = vadd.f32 %v2614, %v2624
        %v2641 = vlaneseq
        %v2642 = vshrl.u32 %v2641, 7
        %v2643 = vsub.s32 0, %v2642
        %v2644 = vrot.slane %v2625, %v2643
        %v2645 = vlaneseq
        %v2646 = vshrl.u32 %v2645, 7
        %v2647 = vsub.s32 0, %v2646
        %v2648 = vrot.slane %v2626, %v2647
        %v2649 = vlaneseq
        %v2650 = vshrl.u32 %v2649, 7
        %v2651 = vsub.s32 0, %v2650
        %v2652 = vrot.slane %v2627, %v2651
        %v2653 = vlaneseq
        %v2654 = vshrl.u32 %v2653, 7
        %v2655 = vsub.s32 0, %v2654
        %v2656 = vrot.slane %v2628, %v2655
        %v2657 = vlaneseq
        %v2658 = vshrl.u32 %v2657, 7
        %v2659 = vsub.s32 0, %v2658
        %v2660 = vrot.slane %v2629, %v2659
        %v2661 = vlaneseq
        %v2662 = vshrl.u32 %v2661, 7
        %v2663 = vsub.s32 0, %v2662
        %v2664 = vrot.slane %v2630, %v2663
        %v2665 = vlaneseq
        %v2666 = vshrl.u32 %v2665, 7
        %v2667 = vsub.s32 0, %v2666
        %v2668 = vrot.slane %v2631, %v2667
        %v2669 = vlaneseq
        %v2670 = vshrl.u32 %v2669, 7
        %v2671 = vsub.s32 0, %v2670
        %v2672 = vrot.slane %v2632, %v2671
        %v2673 = vsel %vm396, %v2648, %v2644
        %v2674 = vsel %vm398, %v2652, %v2673
        %v2675 = vsel %vm400, %v2656, %v2674
        %v2676 = vsel %vm402, %v2660, %v2675
        %v2677 = vsel %vm404, %v2664, %v2676
        %v2678 = vsel %vm406, %v2668, %v2677
        %v2679 = vsel %vm408, %v2672, %v2678
        %2681 = vxpose.xlu0.b32.start [1/16] %v2679, 128
        %2682 = vxpose.xlu0.b32.cont [2/16] 0.0, 128
        %2683 = vxpose.xlu0.b32.cont [3/16] 0.0, 128
        %2684 = vxpose.xlu0.b32.cont [4/16] 0.0, 128
        %2685 = vxpose.xlu0.b32.cont [5/16] 0.0, 128
        %2686 = vxpose.xlu0.b32.cont [6/16] 0.0, 128
        %2687 = vxpose.xlu0.b32.cont [7/16] 0.0, 128
        %2688 = vxpose.xlu0.b32.cont [8/16] 0.0, 128
        %2689 = vxpose.xlu0.b32.cont [9/16] 0.0, 128
        %2690 = vxpose.xlu0.b32.cont [10/16] 0.0, 128
        %2691 = vxpose.xlu0.b32.cont [11/16] 0.0, 128
        %2692 = vxpose.xlu0.b32.cont [12/16] 0.0, 128
        %2693 = vxpose.xlu0.b32.cont [13/16] 0.0, 128
        %2694 = vxpose.xlu0.b32.cont [14/16] 0.0, 128
        %2695 = vxpose.xlu0.b32.cont [15/16] 0.0, 128
        %2696 = vxpose.xlu0.b32.end [16/16] 0.0, 128
        %v2697 = vpop.trf.xlu0
        %v2698 = vpop.trf.xlu0
        %v2699 = vpop.trf.xlu0
        %v2700 = vpop.trf.xlu0
        %v2701 = vpop.trf.xlu0
        %v2702 = vpop.trf.xlu0
        %v2703 = vpop.trf.xlu0
        %v2704 = vpop.trf.xlu0
        %v2705 = vpop.trf.xlu0
        %v2706 = vpop.trf.xlu0
        %v2707 = vpop.trf.xlu0
        %v2708 = vpop.trf.xlu0
        %v2709 = vpop.trf.xlu0
        %v2710 = vpop.trf.xlu0
        %v2711 = vpop.trf.xlu0
        %v2712 = vpop.trf.xlu0
        %s2713 = scalar_lea.vmem %s253, 16 [#allocation11]
        %2714 = vst.msk [vmem:[%s2713] sm:$0xff] %vm2421, %v2697
        %s2715 = sld [smem:[#allocation9 + $0x180]]
        %v2716 = vstv %s2715
        %v2717 = vmul.f32 %v1519, %v2716
        %v2718 = vmul.f32 %v1520, %v2716
        %v2719 = vmul.f32 %v1521, %v2716
        %v2720 = vmul.f32 %v1522, %v2716
        %v2721 = vmul.f32 %v1523, %v2716
        %v2722 = vmul.f32 %v1524, %v2716
        %v2723 = vmul.f32 %v1525, %v2716
        %v2724 = vmul.f32 %v1526, %v2716
        %s2725 = sld [smem:[#allocation9 + $0x181]]
        %v2726 = vstv %s2725
        %v2727 = vmul.f32 %v1769, %v2726
        %v2728 = vmul.f32 %v1770, %v2726
        %v2729 = vmul.f32 %v1771, %v2726
        %v2730 = vmul.f32 %v1772, %v2726
        %v2731 = vmul.f32 %v1773, %v2726
        %v2732 = vmul.f32 %v1774, %v2726
        %v2733 = vmul.f32 %v1775, %v2726
        %v2734 = vmul.f32 %v1776, %v2726
        %v2735 = vadd.f32 %v2717, %v2727
        %v2736 = vadd.f32 %v2718, %v2728
        %v2737 = vadd.f32 %v2719, %v2729
        %v2738 = vadd.f32 %v2720, %v2730
        %v2739 = vadd.f32 %v2721, %v2731
        %v2740 = vadd.f32 %v2722, %v2732
        %v2741 = vadd.f32 %v2723, %v2733
        %v2742 = vadd.f32 %v2724, %v2734
        %s2743 = sld [smem:[#allocation9 + $0x182]]
        %v2744 = vstv %s2743
        %v2745 = vmul.f32 %v2019, %v2744
        %v2746 = vmul.f32 %v2020, %v2744
        %v2747 = vmul.f32 %v2021, %v2744
        %v2748 = vmul.f32 %v2022, %v2744
        %v2749 = vmul.f32 %v2023, %v2744
        %v2750 = vmul.f32 %v2024, %v2744
        %v2751 = vmul.f32 %v2025, %v2744
        %v2752 = vmul.f32 %v2026, %v2744
        %v2753 = vadd.f32 %v2735, %v2745
        %v2754 = vadd.f32 %v2736, %v2746
        %v2755 = vadd.f32 %v2737, %v2747
        %v2756 = vadd.f32 %v2738, %v2748
        %v2757 = vadd.f32 %v2739, %v2749
        %v2758 = vadd.f32 %v2740, %v2750
        %v2759 = vadd.f32 %v2741, %v2751
        %v2760 = vadd.f32 %v2742, %v2752
        %s2761 = sld [smem:[#allocation9 + $0x183]]
        %v2762 = vstv %s2761
        %v2763 = vmul.f32 %v2269, %v2762
        %v2764 = vmul.f32 %v2270, %v2762
        %v2765 = vmul.f32 %v2271, %v2762
        %v2766 = vmul.f32 %v2272, %v2762
        %v2767 = vmul.f32 %v2273, %v2762
        %v2768 = vmul.f32 %v2274, %v2762
        %v2769 = vmul.f32 %v2275, %v2762
        %v2770 = vmul.f32 %v2276, %v2762
        %v2771 = vadd.f32 %v2753, %v2763
        %v2772 = vadd.f32 %v2754, %v2764
        %v2773 = vadd.f32 %v2755, %v2765
        %v2774 = vadd.f32 %v2756, %v2766
        %v2775 = vadd.f32 %v2757, %v2767
        %v2776 = vadd.f32 %v2758, %v2768
        %v2777 = vadd.f32 %v2759, %v2769
        %v2778 = vadd.f32 %v2760, %v2770
        %v2787 = vlaneseq
        %v2788 = vshrl.u32 %v2787, 7
        %v2789 = vsub.s32 0, %v2788
        %v2790 = vrot.slane %v2771, %v2789
        %v2791 = vlaneseq
        %v2792 = vshrl.u32 %v2791, 7
        %v2793 = vsub.s32 0, %v2792
        %v2794 = vrot.slane %v2772, %v2793
        %v2795 = vlaneseq
        %v2796 = vshrl.u32 %v2795, 7
        %v2797 = vsub.s32 0, %v2796
        %v2798 = vrot.slane %v2773, %v2797
        %v2799 = vlaneseq
        %v2800 = vshrl.u32 %v2799, 7
        %v2801 = vsub.s32 0, %v2800
        %v2802 = vrot.slane %v2774, %v2801
        %v2803 = vlaneseq
        %v2804 = vshrl.u32 %v2803, 7
        %v2805 = vsub.s32 0, %v2804
        %v2806 = vrot.slane %v2775, %v2805
        %v2807 = vlaneseq
        %v2808 = vshrl.u32 %v2807, 7
        %v2809 = vsub.s32 0, %v2808
        %v2810 = vrot.slane %v2776, %v2809
        %v2811 = vlaneseq
        %v2812 = vshrl.u32 %v2811, 7
        %v2813 = vsub.s32 0, %v2812
        %v2814 = vrot.slane %v2777, %v2813
        %v2815 = vlaneseq
        %v2816 = vshrl.u32 %v2815, 7
        %v2817 = vsub.s32 0, %v2816
        %v2818 = vrot.slane %v2778, %v2817
        %v2819 = vsel %vm396, %v2794, %v2790
        %v2820 = vsel %vm398, %v2798, %v2819
        %v2821 = vsel %vm400, %v2802, %v2820
        %v2822 = vsel %vm402, %v2806, %v2821
        %v2823 = vsel %vm404, %v2810, %v2822
        %v2824 = vsel %vm406, %v2814, %v2823
        %v2825 = vsel %vm408, %v2818, %v2824
        %2827 = vxpose.xlu0.b32.start [1/16] %v2825, 128
        %2828 = vxpose.xlu0.b32.cont [2/16] 0.0, 128
        %2829 = vxpose.xlu0.b32.cont [3/16] 0.0, 128
        %2830 = vxpose.xlu0.b32.cont [4/16] 0.0, 128
        %2831 = vxpose.xlu0.b32.cont [5/16] 0.0, 128
        %2832 = vxpose.xlu0.b32.cont [6/16] 0.0, 128
        %2833 = vxpose.xlu0.b32.cont [7/16] 0.0, 128
        %2834 = vxpose.xlu0.b32.cont [8/16] 0.0, 128
        %2835 = vxpose.xlu0.b32.cont [9/16] 0.0, 128
        %2836 = vxpose.xlu0.b32.cont [10/16] 0.0, 128
        %2837 = vxpose.xlu0.b32.cont [11/16] 0.0, 128
        %2838 = vxpose.xlu0.b32.cont [12/16] 0.0, 128
        %2839 = vxpose.xlu0.b32.cont [13/16] 0.0, 128
        %2840 = vxpose.xlu0.b32.cont [14/16] 0.0, 128
        %2841 = vxpose.xlu0.b32.cont [15/16] 0.0, 128
        %2842 = vxpose.xlu0.b32.end [16/16] 0.0, 128
        %v2843 = vpop.trf.xlu0
        %v2844 = vpop.trf.xlu0
        %v2845 = vpop.trf.xlu0
        %v2846 = vpop.trf.xlu0
        %v2847 = vpop.trf.xlu0
        %v2848 = vpop.trf.xlu0
        %v2849 = vpop.trf.xlu0
        %v2850 = vpop.trf.xlu0
        %v2851 = vpop.trf.xlu0
        %v2852 = vpop.trf.xlu0
        %v2853 = vpop.trf.xlu0
        %v2854 = vpop.trf.xlu0
        %v2855 = vpop.trf.xlu0
        %v2856 = vpop.trf.xlu0
        %v2857 = vpop.trf.xlu0
        %v2858 = vpop.trf.xlu0
        %s2859 = scalar_lea.vmem %s253, 24 [#allocation11]
        %2860 = vst.msk [vmem:[%s2859] sm:$0xff] %vm2421, %v2843
        %s2861 = sand.u32 %s121, 1
        %s2862 = scalar_lea.sflag [#allocation4], %s2861
        %s2863 = sand.u32 %s121, 1
        %s2864 = smul.addr %s2863, 32
        %s2865 = scalar_lea.vmem [#allocation11], %s2864
        // Predicated region
        $region53: #{tpu_custom_call.1} parent=35 // pred_check
          %p2866 = pneg %p131
        $region54: #{tpu_custom_call.1} parent=35 // pred_check_branch
          %2868 = sbr.rel (%p2866) target = $region56
        $region55: #{tpu_custom_call.1} parent=35 // pred_region
          %s2870 = ssub.s32 512, 512
          %2871 = vsyncadd %s2862, %s2870
          %s2872 = smul.addr %s24, 4
          %s2873 = smul.addr %s2872, 128
          %s2874 = scalar_lea.hbm %s4, %s2873
          %s2875 = sshll.u32 %s2865, 4
          %s2876 = int_to_ptr.vmem [resolvable:$true] %s2875
          %2881 = dma.vmem_to_hbm [thread:$0]  %s2876, 512, %s2874, %s2862, 128, 128, 8
        $region56: #{tpu_custom_call.1} parent=35 // pred_fallthru
          _
      $region36: #{tpu_custom_call.1} parent=5 // pred_fallthru
        _
      %p2882 = scmp.le.s32.totalorder 2, %s19
      // Predicated region
      $region57: #{tpu_custom_call.1} parent=5 // pred_check
        %p2883 = pneg %p2882
      $region58: #{tpu_custom_call.1} parent=5 // pred_check_branch
        %2885 = sbr.rel (%p2883) target = $region60
      $region59: #{tpu_custom_call.1} parent=5 // pred_region
        %s2886 = ssub.s32 %s19, 2
        // Predicated region
        $region61: #{tpu_custom_call.1} parent=59 // pred_check
          %p2887 = pneg %p137
        $region62: #{tpu_custom_call.1} parent=59 // pred_check_branch
          %2889 = sbr.rel (%p2887) target = $region64
        $region63: #{tpu_custom_call.1} parent=59 // pred_region
          %s2890 = sand.u32 %s122, 1
          %s2891 = scalar_lea.sflag [#allocation4], %s2890
          %s2892 = sand.u32 %s122, 1
          %s2893 = smul.addr %s2892, 32
          %s2894 = scalar_lea.vmem [#allocation11], %s2893
          %2895 = dma.done %s2891, 512
        $region64: #{tpu_custom_call.1} parent=59 // pred_fallthru
          _
      $region60: #{tpu_custom_call.1} parent=5 // pred_fallthru
        _
    $region6: #{tpu_custom_call.1} parent=1 // loop_footer
      %s23 = sadd.s32 1, %s19
    $region7: #{tpu_custom_call.1} parent=1 // loop_footer_branch
      %18 = sbr.rel target = $region3
    $region8: #{tpu_custom_call.1} parent=1 // loop_exit
      _
    %2896 = vsyncpa [#allocation3], 1
    %s2897 = scalar_lea.sflag [#allocation3], 1
    %2898 = vsyncpa %s2897, 1
    %2899 = vsyncpa [#allocation4], 1
    %s2900 = scalar_lea.sflag [#allocation4], 1
    %2901 = vsyncpa %s2900, 1
    %2902 = vsyncpa [#allocation5], 1
    %s2903 = scalar_lea.sflag [#allocation5], 1
    %2904 = vsyncpa %s2903, 1
    %2905 = vsyncpa [#allocation6], 1
    %s2906 = scalar_lea.sflag [#allocation6], 1
    %2907 = vsyncpa %s2906, 1
    %2908 = vsyncpa [#allocation10], 1

</llo_original>
